<compile_context>
chip_gen: v5e
topology: v5e:2x2
jax: 0.10.0
libtpu: 0.0.40
codegen_flags: <defaults>
</compile_context>

<pallas_src>
import jax
import jax.numpy as jnp
from jax.experimental import pallas as pl
from jax.experimental.pallas import tpu as pltpu


def _make_conv_act_kernel(cin_p, cout, k, wp, hout, wout, wide):
    nsp = hout * wout

    def kernel(xs_ref, w_ref, b_ref, o_ref, cbuf_ref):
        # xs_ref:   (1, cin_p, lanes) zero-padded input; lane = i*wp + j (padded spatial)
        # w_ref:    (k*k, cout, cin_p) per-tap weights (pre-flipped for conv_transpose)
        # b_ref:    (cout, 1)
        # o_ref:    (1, cout*hout*wout) flattened NCHW output
        # cbuf_ref: (cout, hout*wout) VMEM scratch for lane compaction
        xs = xs_ref[0]                                    # (cin_p, lanes)

        # "wide" spatial layout: output lane p corresponds to (i, j) = (p//wp, p%wp)
        acc = jnp.zeros((cout, wide), jnp.float32)
        for kh in range(k):
            for kw in range(k):
                t = kh * k + kw
                shift = kh * wp + kw
                acc = acc + jnp.dot(
                    w_ref[t], xs[:, shift:shift + wide],
                    preferred_element_type=jnp.float32)

        v1 = acc + b_ref[...]                             # conv_transpose + bias
        v2 = jnp.maximum(v1, 0.0)                         # relu
        v3 = jax.nn.sigmoid(v2)                           # sigmoid
        v5 = jnp.tanh(v3)                                 # tanh (v4 in torch is unused)
        v6 = jnp.tanh(v5)                                 # tanh

        # compact stride-wp spatial lanes into dense hout*wout lanes
        for i in range(hout):
            cbuf_ref[:, i * wout:(i + 1) * wout] = v6[:, i * wp:i * wp + wout]
        # emit flattened NCHW rows: out[0, co*nsp + i*wout + j]  (lane-dense store)
        for co in range(cout):
            o_ref[:, co * nsp:(co + 1) * nsp] = cbuf_ref[co:co + 1, :]

    return kernel


@jax.jit
def model_forward(x, weight, bias):
    """x: (N, Cin, H, W) f32, weight: (Cin, Cout, K, K), bias: (Cout,).
    Equivalent to torch ConvTranspose2d(Cin, Cout, K, padding=3) followed by
    relu, sigmoid, tanh, tanh and flatten(start_dim=1)."""
    N, cin, H, W = x.shape
    cout, k = weight.shape[1], weight.shape[2]
    pad_ct = 3                                   # ConvTranspose2d padding
    pad = k - 1 - pad_ct                         # equivalent-conv padding (=3)
    hout = H - 1 - 2 * pad_ct + k                # = 8
    wout = W - 1 - 2 * pad_ct + k                # = 8
    hp, wp = H + 2 * pad, W + 2 * pad            # padded spatial (14, 14)
    nsp = hout * wout                            # 64
    cin_p = -(-cin // 8) * 8                     # sublane-align contraction dim

    # lane widths (multiples of 128)
    wide = -(-((hout - 1) * wp + wout) // 128) * 128        # 128
    max_shift = (k - 1) * wp + (k - 1)
    lanes = max(-(-(max_shift + wide) // 128) * 128,
                -(-(hp * wp) // 128) * 128)                  # 256

    # --- tiny host-side prep (a few ops on ~4 KB tensors) ---
    xp = jnp.pad(x, ((0, 0), (0, 0), (pad, pad), (pad, pad)))
    xs = xp.reshape(N, cin, hp * wp)
    xs = jnp.pad(xs, ((0, 0), (0, cin_p - cin), (0, lanes - hp * wp)))
    xs = xs.astype(jnp.float32)

    # stride-1 conv_transpose == conv with flipped kernel & swapped channels
    w_taps = jnp.flip(weight, axis=(2, 3)).transpose(2, 3, 1, 0)   # (k,k,cout,cin)
    w_taps = w_taps.reshape(k * k, cout, cin)
    w_taps = jnp.pad(w_taps, ((0, 0), (0, 0), (0, cin_p - cin))).astype(jnp.float32)
    b2 = bias.reshape(cout, 1).astype(jnp.float32)

    kernel = _make_conv_act_kernel(cin_p, cout, k, wp, hout, wout, wide)

    return pl.pallas_call(
        kernel,
        out_shape=jax.ShapeDtypeStruct((N, cout * nsp), jnp.float32),
        grid=(N,),
        in_specs=[
            pl.BlockSpec((1, cin_p, lanes), lambda n: (n, 0, 0)),
            pl.BlockSpec((k * k, cout, cin_p), lambda n: (0, 0, 0)),
            pl.BlockSpec((cout, 1), lambda n: (0, 0)),
        ],
        out_specs=pl.BlockSpec((1, cout * nsp), lambda n: (n, 0)),
        scratch_shapes=[pltpu.VMEM((cout, nsp), jnp.float32)],
        compiler_params=pltpu.CompilerParams(
            dimension_semantics=("parallel",)),
    )(xs, w_taps, b2)


def _reference(x, weight, bias, pad_ct=3):
    """Direct (scatter-add) conv_transpose reference in plain JAX."""
    N, cin, H, W = x.shape
    cout, k = weight.shape[1], weight.shape[2]
    hout = H - 1 - 2 * pad_ct + k
    wout = W - 1 - 2 * pad_ct + k
    full = jnp.zeros((N, cout, H + k - 1, W + k - 1), jnp.float32)
    for kh in range(k):
        for kw in range(k):
            contrib = jnp.einsum('ncij,co->noij', x, weight[:, :, kh, kw])
            full = full.at[:, :, kh:kh + H, kw:kw + W].add(contrib)
    v1 = full[:, :, pad_ct:pad_ct + hout, pad_ct:pad_ct + wout] \
        + bias[None, :, None, None]
    v2 = jnp.maximum(v1, 0.0)
    v3 = jax.nn.sigmoid(v2)
    v6 = jnp.tanh(jnp.tanh(v3))
    return v6.reshape(N, -1)


if __name__ == "__main__":
    key = jax.random.PRNGKey(0)
    kx, kw_, kb = jax.random.split(key, 3)

    N, Cin, H, W = 1, 5, 8, 8
    Cout, K = 16, 7

    x = jax.random.normal(kx, (N, Cin, H, W), dtype=jnp.float32)
    bound = 1.0 / jnp.sqrt(jnp.float32(Cin * K * K))
    weight = jax.random.uniform(kw_, (Cin, Cout, K, K), jnp.float32, -bound, bound)
    bias = jax.random.uniform(kb, (Cout,), jnp.float32, -bound, bound)

    out = model_forward(x, weight, bias)
    jax.block_until_ready(out)
    assert out.shape == (N, Cout * 8 * 8)

    ref = _reference(x, weight, bias)
    assert jnp.allclose(out, ref, atol=5e-4, rtol=5e-4), \
        float(jnp.max(jnp.abs(out - ref)))
    print("KERNEL_OK")
</pallas_src>

<mosaic_0001>
module attributes {stable_mosaic.version = 11 : i64} {
  func.func @kernel(%arg0: i32, %arg1: memref<1x8x256xf32, #tpu.memory_space<vmem>>, %arg2: memref<49x16x8xf32, #tpu.memory_space<vmem>>, %arg3: memref<16x1xf32, #tpu.memory_space<vmem>>, %arg4: memref<1x1024xf32, #tpu.memory_space<vmem>>, %arg5: memref<16x64xf32, #tpu.memory_space<vmem>>) attributes {dimension_semantics = [#tpu.dimension_semantics<parallel>], iteration_bounds = array<i64: 1>, scalar_prefetch = 0 : i64, scratch_operands = 1 : i64, tpu.core_type = #tpu.core_type<tc>, window_params = [{transform_indices = @transform_0, window_bounds = array<i64: 1, 8, 256>}, {pipeline_mode = #tpu.pipeline_mode<synchronous>, transform_indices = @transform_1, window_bounds = array<i64: 49, 16, 8>}, {pipeline_mode = #tpu.pipeline_mode<synchronous>, transform_indices = @transform_2, window_bounds = array<i64: 16, 1>}, {transform_indices = @transform_3, window_bounds = array<i64: 1, 1024>}]} {
    %c0 = arith.constant 0 : index
    %c0_0 = arith.constant 0 : index
    %c0_1 = arith.constant 0 : index
    %0 = vector.load %arg1[%c0, %c0_0, %c0_1] : memref<1x8x256xf32, #tpu.memory_space<vmem>>, vector<1x8x256xf32>
    %1 = vector.shape_cast %0 : vector<1x8x256xf32> to vector<8x256xf32>
    %cst = arith.constant 0.000000e+00 : f32
    %2 = vector.broadcast %cst : f32 to vector<16x128xf32>
    %c0_2 = arith.constant 0 : index
    %c0_3 = arith.constant 0 : index
    %c0_4 = arith.constant 0 : index
    %3 = vector.load %arg2[%c0_2, %c0_3, %c0_4] : memref<49x16x8xf32, #tpu.memory_space<vmem>>, vector<1x16x8xf32>
    %4 = vector.shape_cast %3 : vector<1x16x8xf32> to vector<16x8xf32>
    %5 = vector.extract_strided_slice %1 {offsets = [0, 0], sizes = [8, 128], strides = [1, 1]} : vector<8x256xf32> to vector<8x128xf32>
    %cst_5 = arith.constant dense<0.000000e+00> : vector<16x128xf32>
    %6 = tpu.matmul %4, %5, %cst_5 {dimension_numbers = #tpu.dot_dimension_numbers<[1], [0], [0], [1], [0, 0, 1, 1], [], []>} : vector<16x8xf32>, vector<8x128xf32>, vector<16x128xf32> -> vector<16x128xf32>
    %7 = arith.addf %2, %6 : vector<16x128xf32>
    %c1 = arith.constant 1 : index
    %c0_6 = arith.constant 0 : index
    %c0_7 = arith.constant 0 : index
    %8 = vector.load %arg2[%c1, %c0_6, %c0_7] : memref<49x16x8xf32, #tpu.memory_space<vmem>>, vector<1x16x8xf32>
    %9 = vector.shape_cast %8 : vector<1x16x8xf32> to vector<16x8xf32>
    %10 = vector.extract_strided_slice %1 {offsets = [0, 1], sizes = [8, 128], strides = [1, 1]} : vector<8x256xf32> to vector<8x128xf32>
    %cst_8 = arith.constant dense<0.000000e+00> : vector<16x128xf32>
    %11 = tpu.matmul %9, %10, %cst_8 {dimension_numbers = #tpu.dot_dimension_numbers<[1], [0], [0], [1], [0, 0, 1, 1], [], []>} : vector<16x8xf32>, vector<8x128xf32>, vector<16x128xf32> -> vector<16x128xf32>
    %12 = arith.addf %7, %11 : vector<16x128xf32>
    %c2 = arith.constant 2 : index
    %c0_9 = arith.constant 0 : index
    %c0_10 = arith.constant 0 : index
    %13 = vector.load %arg2[%c2, %c0_9, %c0_10] : memref<49x16x8xf32, #tpu.memory_space<vmem>>, vector<1x16x8xf32>
    %14 = vector.shape_cast %13 : vector<1x16x8xf32> to vector<16x8xf32>
    %15 = vector.extract_strided_slice %1 {offsets = [0, 2], sizes = [8, 128], strides = [1, 1]} : vector<8x256xf32> to vector<8x128xf32>
    %cst_11 = arith.constant dense<0.000000e+00> : vector<16x128xf32>
    %16 = tpu.matmul %14, %15, %cst_11 {dimension_numbers = #tpu.dot_dimension_numbers<[1], [0], [0], [1], [0, 0, 1, 1], [], []>} : vector<16x8xf32>, vector<8x128xf32>, vector<16x128xf32> -> vector<16x128xf32>
    %17 = arith.addf %12, %16 : vector<16x128xf32>
    %c3 = arith.constant 3 : index
    %c0_12 = arith.constant 0 : index
    %c0_13 = arith.constant 0 : index
    %18 = vector.load %arg2[%c3, %c0_12, %c0_13] : memref<49x16x8xf32, #tpu.memory_space<vmem>>, vector<1x16x8xf32>
    %19 = vector.shape_cast %18 : vector<1x16x8xf32> to vector<16x8xf32>
    %20 = vector.extract_strided_slice %1 {offsets = [0, 3], sizes = [8, 128], strides = [1, 1]} : vector<8x256xf32> to vector<8x128xf32>
    %cst_14 = arith.constant dense<0.000000e+00> : vector<16x128xf32>
    %21 = tpu.matmul %19, %20, %cst_14 {dimension_numbers = #tpu.dot_dimension_numbers<[1], [0], [0], [1], [0, 0, 1, 1], [], []>} : vector<16x8xf32>, vector<8x128xf32>, vector<16x128xf32> -> vector<16x128xf32>
    %22 = arith.addf %17, %21 : vector<16x128xf32>
    %c4 = arith.constant 4 : index
    %c0_15 = arith.constant 0 : index
    %c0_16 = arith.constant 0 : index
    %23 = vector.load %arg2[%c4, %c0_15, %c0_16] : memref<49x16x8xf32, #tpu.memory_space<vmem>>, vector<1x16x8xf32>
    %24 = vector.shape_cast %23 : vector<1x16x8xf32> to vector<16x8xf32>
    %25 = vector.extract_strided_slice %1 {offsets = [0, 4], sizes = [8, 128], strides = [1, 1]} : vector<8x256xf32> to vector<8x128xf32>
    %cst_17 = arith.constant dense<0.000000e+00> : vector<16x128xf32>
    %26 = tpu.matmul %24, %25, %cst_17 {dimension_numbers = #tpu.dot_dimension_numbers<[1], [0], [0], [1], [0, 0, 1, 1], [], []>} : vector<16x8xf32>, vector<8x128xf32>, vector<16x128xf32> -> vector<16x128xf32>
    %27 = arith.addf %22, %26 : vector<16x128xf32>
    %c5 = arith.constant 5 : index
    %c0_18 = arith.constant 0 : index
    %c0_19 = arith.constant 0 : index
    %28 = vector.load %arg2[%c5, %c0_18, %c0_19] : memref<49x16x8xf32, #tpu.memory_space<vmem>>, vector<1x16x8xf32>
    %29 = vector.shape_cast %28 : vector<1x16x8xf32> to vector<16x8xf32>
    %30 = vector.extract_strided_slice %1 {offsets = [0, 5], sizes = [8, 128], strides = [1, 1]} : vector<8x256xf32> to vector<8x128xf32>
    %cst_20 = arith.constant dense<0.000000e+00> : vector<16x128xf32>
    %31 = tpu.matmul %29, %30, %cst_20 {dimension_numbers = #tpu.dot_dimension_numbers<[1], [0], [0], [1], [0, 0, 1, 1], [], []>} : vector<16x8xf32>, vector<8x128xf32>, vector<16x128xf32> -> vector<16x128xf32>
    %32 = arith.addf %27, %31 : vector<16x128xf32>
    %c6 = arith.constant 6 : index
    %c0_21 = arith.constant 0 : index
    %c0_22 = arith.constant 0 : index
    %33 = vector.load %arg2[%c6, %c0_21, %c0_22] : memref<49x16x8xf32, #tpu.memory_space<vmem>>, vector<1x16x8xf32>
    %34 = vector.shape_cast %33 : vector<1x16x8xf32> to vector<16x8xf32>
    %35 = vector.extract_strided_slice %1 {offsets = [0, 6], sizes = [8, 128], strides = [1, 1]} : vector<8x256xf32> to vector<8x128xf32>
    %cst_23 = arith.constant dense<0.000000e+00> : vector<16x128xf32>
    %36 = tpu.matmul %34, %35, %cst_23 {dimension_numbers = #tpu.dot_dimension_numbers<[1], [0], [0], [1], [0, 0, 1, 1], [], []>} : vector<16x8xf32>, vector<8x128xf32>, vector<16x128xf32> -> vector<16x128xf32>
    %37 = arith.addf %32, %36 : vector<16x128xf32>
    %c7 = arith.constant 7 : index
    %c0_24 = arith.constant 0 : index
    %c0_25 = arith.constant 0 : index
    %38 = vector.load %arg2[%c7, %c0_24, %c0_25] : memref<49x16x8xf32, #tpu.memory_space<vmem>>, vector<1x16x8xf32>
    %39 = vector.shape_cast %38 : vector<1x16x8xf32> to vector<16x8xf32>
    %40 = vector.extract_strided_slice %1 {offsets = [0, 14], sizes = [8, 128], strides = [1, 1]} : vector<8x256xf32> to vector<8x128xf32>
    %cst_26 = arith.constant dense<0.000000e+00> : vector<16x128xf32>
    %41 = tpu.matmul %39, %40, %cst_26 {dimension_numbers = #tpu.dot_dimension_numbers<[1], [0], [0], [1], [0, 0, 1, 1], [], []>} : vector<16x8xf32>, vector<8x128xf32>, vector<16x128xf32> -> vector<16x128xf32>
    %42 = arith.addf %37, %41 : vector<16x128xf32>
    %c8 = arith.constant 8 : index
    %c0_27 = arith.constant 0 : index
    %c0_28 = arith.constant 0 : index
    %43 = vector.load %arg2[%c8, %c0_27, %c0_28] : memref<49x16x8xf32, #tpu.memory_space<vmem>>, vector<1x16x8xf32>
    %44 = vector.shape_cast %43 : vector<1x16x8xf32> to vector<16x8xf32>
    %45 = vector.extract_strided_slice %1 {offsets = [0, 15], sizes = [8, 128], strides = [1, 1]} : vector<8x256xf32> to vector<8x128xf32>
    %cst_29 = arith.constant dense<0.000000e+00> : vector<16x128xf32>
    %46 = tpu.matmul %44, %45, %cst_29 {dimension_numbers = #tpu.dot_dimension_numbers<[1], [0], [0], [1], [0, 0, 1, 1], [], []>} : vector<16x8xf32>, vector<8x128xf32>, vector<16x128xf32> -> vector<16x128xf32>
    %47 = arith.addf %42, %46 : vector<16x128xf32>
    %c9 = arith.constant 9 : index
    %c0_30 = arith.constant 0 : index
    %c0_31 = arith.constant 0 : index
    %48 = vector.load %arg2[%c9, %c0_30, %c0_31] : memref<49x16x8xf32, #tpu.memory_space<vmem>>, vector<1x16x8xf32>
    %49 = vector.shape_cast %48 : vector<1x16x8xf32> to vector<16x8xf32>
    %50 = vector.extract_strided_slice %1 {offsets = [0, 16], sizes = [8, 128], strides = [1, 1]} : vector<8x256xf32> to vector<8x128xf32>
    %cst_32 = arith.constant dense<0.000000e+00> : vector<16x128xf32>
    %51 = tpu.matmul %49, %50, %cst_32 {dimension_numbers = #tpu.dot_dimension_numbers<[1], [0], [0], [1], [0, 0, 1, 1], [], []>} : vector<16x8xf32>, vector<8x128xf32>, vector<16x128xf32> -> vector<16x128xf32>
    %52 = arith.addf %47, %51 : vector<16x128xf32>
    %c10 = arith.constant 10 : index
    %c0_33 = arith.constant 0 : index
    %c0_34 = arith.constant 0 : index
    %53 = vector.load %arg2[%c10, %c0_33, %c0_34] : memref<49x16x8xf32, #tpu.memory_space<vmem>>, vector<1x16x8xf32>
    %54 = vector.shape_cast %53 : vector<1x16x8xf32> to vector<16x8xf32>
    %55 = vector.extract_strided_slice %1 {offsets = [0, 17], sizes = [8, 128], strides = [1, 1]} : vector<8x256xf32> to vector<8x128xf32>
    %cst_35 = arith.constant dense<0.000000e+00> : vector<16x128xf32>
    %56 = tpu.matmul %54, %55, %cst_35 {dimension_numbers = #tpu.dot_dimension_numbers<[1], [0], [0], [1], [0, 0, 1, 1], [], []>} : vector<16x8xf32>, vector<8x128xf32>, vector<16x128xf32> -> vector<16x128xf32>
    %57 = arith.addf %52, %56 : vector<16x128xf32>
    %c11 = arith.constant 11 : index
    %c0_36 = arith.constant 0 : index
    %c0_37 = arith.constant 0 : index
    %58 = vector.load %arg2[%c11, %c0_36, %c0_37] : memref<49x16x8xf32, #tpu.memory_space<vmem>>, vector<1x16x8xf32>
    %59 = vector.shape_cast %58 : vector<1x16x8xf32> to vector<16x8xf32>
    %60 = vector.extract_strided_slice %1 {offsets = [0, 18], sizes = [8, 128], strides = [1, 1]} : vector<8x256xf32> to vector<8x128xf32>
    %cst_38 = arith.constant dense<0.000000e+00> : vector<16x128xf32>
    %61 = tpu.matmul %59, %60, %cst_38 {dimension_numbers = #tpu.dot_dimension_numbers<[1], [0], [0], [1], [0, 0, 1, 1], [], []>} : vector<16x8xf32>, vector<8x128xf32>, vector<16x128xf32> -> vector<16x128xf32>
    %62 = arith.addf %57, %61 : vector<16x128xf32>
    %c12 = arith.constant 12 : index
    %c0_39 = arith.constant 0 : index
    %c0_40 = arith.constant 0 : index
    %63 = vector.load %arg2[%c12, %c0_39, %c0_40] : memref<49x16x8xf32, #tpu.memory_space<vmem>>, vector<1x16x8xf32>
    %64 = vector.shape_cast %63 : vector<1x16x8xf32> to vector<16x8xf32>
    %65 = vector.extract_strided_slice %1 {offsets = [0, 19], sizes = [8, 128], strides = [1, 1]} : vector<8x256xf32> to vector<8x128xf32>
    %cst_41 = arith.constant dense<0.000000e+00> : vector<16x128xf32>
    %66 = tpu.matmul %64, %65, %cst_41 {dimension_numbers = #tpu.dot_dimension_numbers<[1], [0], [0], [1], [0, 0, 1, 1], [], []>} : vector<16x8xf32>, vector<8x128xf32>, vector<16x128xf32> -> vector<16x128xf32>
    %67 = arith.addf %62, %66 : vector<16x128xf32>
    %c13 = arith.constant 13 : index
    %c0_42 = arith.constant 0 : index
    %c0_43 = arith.constant 0 : index
    %68 = vector.load %arg2[%c13, %c0_42, %c0_43] : memref<49x16x8xf32, #tpu.memory_space<vmem>>, vector<1x16x8xf32>
    %69 = vector.shape_cast %68 : vector<1x16x8xf32> to vector<16x8xf32>
    %70 = vector.extract_strided_slice %1 {offsets = [0, 20], sizes = [8, 128], strides = [1, 1]} : vector<8x256xf32> to vector<8x128xf32>
    %cst_44 = arith.constant dense<0.000000e+00> : vector<16x128xf32>
    %71 = tpu.matmul %69, %70, %cst_44 {dimension_numbers = #tpu.dot_dimension_numbers<[1], [0], [0], [1], [0, 0, 1, 1], [], []>} : vector<16x8xf32>, vector<8x128xf32>, vector<16x128xf32> -> vector<16x128xf32>
    %72 = arith.addf %67, %71 : vector<16x128xf32>
    %c14 = arith.constant 14 : index
    %c0_45 = arith.constant 0 : index
    %c0_46 = arith.constant 0 : index
    %73 = vector.load %arg2[%c14, %c0_45, %c0_46] : memref<49x16x8xf32, #tpu.memory_space<vmem>>, vector<1x16x8xf32>
    %74 = vector.shape_cast %73 : vector<1x16x8xf32> to vector<16x8xf32>
    %75 = vector.extract_strided_slice %1 {offsets = [0, 28], sizes = [8, 128], strides = [1, 1]} : vector<8x256xf32> to vector<8x128xf32>
    %cst_47 = arith.constant dense<0.000000e+00> : vector<16x128xf32>
    %76 = tpu.matmul %74, %75, %cst_47 {dimension_numbers = #tpu.dot_dimension_numbers<[1], [0], [0], [1], [0, 0, 1, 1], [], []>} : vector<16x8xf32>, vector<8x128xf32>, vector<16x128xf32> -> vector<16x128xf32>
    %77 = arith.addf %72, %76 : vector<16x128xf32>
    %c15 = arith.constant 15 : index
    %c0_48 = arith.constant 0 : index
    %c0_49 = arith.constant 0 : index
    %78 = vector.load %arg2[%c15, %c0_48, %c0_49] : memref<49x16x8xf32, #tpu.memory_space<vmem>>, vector<1x16x8xf32>
    %79 = vector.shape_cast %78 : vector<1x16x8xf32> to vector<16x8xf32>
    %80 = vector.extract_strided_slice %1 {offsets = [0, 29], sizes = [8, 128], strides = [1, 1]} : vector<8x256xf32> to vector<8x128xf32>
    %cst_50 = arith.constant dense<0.000000e+00> : vector<16x128xf32>
    %81 = tpu.matmul %79, %80, %cst_50 {dimension_numbers = #tpu.dot_dimension_numbers<[1], [0], [0], [1], [0, 0, 1, 1], [], []>} : vector<16x8xf32>, vector<8x128xf32>, vector<16x128xf32> -> vector<16x128xf32>
    %82 = arith.addf %77, %81 : vector<16x128xf32>
    %c16 = arith.constant 16 : index
    %c0_51 = arith.constant 0 : index
    %c0_52 = arith.constant 0 : index
    %83 = vector.load %arg2[%c16, %c0_51, %c0_52] : memref<49x16x8xf32, #tpu.memory_space<vmem>>, vector<1x16x8xf32>
    %84 = vector.shape_cast %83 : vector<1x16x8xf32> to vector<16x8xf32>
    %85 = vector.extract_strided_slice %1 {offsets = [0, 30], sizes = [8, 128], strides = [1, 1]} : vector<8x256xf32> to vector<8x128xf32>
    %cst_53 = arith.constant dense<0.000000e+00> : vector<16x128xf32>
    %86 = tpu.matmul %84, %85, %cst_53 {dimension_numbers = #tpu.dot_dimension_numbers<[1], [0], [0], [1], [0, 0, 1, 1], [], []>} : vector<16x8xf32>, vector<8x128xf32>, vector<16x128xf32> -> vector<16x128xf32>
    %87 = arith.addf %82, %86 : vector<16x128xf32>
    %c17 = arith.constant 17 : index
    %c0_54 = arith.constant 0 : index
    %c0_55 = arith.constant 0 : index
    %88 = vector.load %arg2[%c17, %c0_54, %c0_55] : memref<49x16x8xf32, #tpu.memory_space<vmem>>, vector<1x16x8xf32>
    %89 = vector.shape_cast %88 : vector<1x16x8xf32> to vector<16x8xf32>
    %90 = vector.extract_strided_slice %1 {offsets = [0, 31], sizes = [8, 128], strides = [1, 1]} : vector<8x256xf32> to vector<8x128xf32>
    %cst_56 = arith.constant dense<0.000000e+00> : vector<16x128xf32>
    %91 = tpu.matmul %89, %90, %cst_56 {dimension_numbers = #tpu.dot_dimension_numbers<[1], [0], [0], [1], [0, 0, 1, 1], [], []>} : vector<16x8xf32>, vector<8x128xf32>, vector<16x128xf32> -> vector<16x128xf32>
    %92 = arith.addf %87, %91 : vector<16x128xf32>
    %c18 = arith.constant 18 : index
    %c0_57 = arith.constant 0 : index
    %c0_58 = arith.constant 0 : index
    %93 = vector.load %arg2[%c18, %c0_57, %c0_58] : memref<49x16x8xf32, #tpu.memory_space<vmem>>, vector<1x16x8xf32>
    %94 = vector.shape_cast %93 : vector<1x16x8xf32> to vector<16x8xf32>
    %95 = vector.extract_strided_slice %1 {offsets = [0, 32], sizes = [8, 128], strides = [1, 1]} : vector<8x256xf32> to vector<8x128xf32>
    %cst_59 = arith.constant dense<0.000000e+00> : vector<16x128xf32>
    %96 = tpu.matmul %94, %95, %cst_59 {dimension_numbers = #tpu.dot_dimension_numbers<[1], [0], [0], [1], [0, 0, 1, 1], [], []>} : vector<16x8xf32>, vector<8x128xf32>, vector<16x128xf32> -> vector<16x128xf32>
    %97 = arith.addf %92, %96 : vector<16x128xf32>
    %c19 = arith.constant 19 : index
    %c0_60 = arith.constant 0 : index
    %c0_61 = arith.constant 0 : index
    %98 = vector.load %arg2[%c19, %c0_60, %c0_61] : memref<49x16x8xf32, #tpu.memory_space<vmem>>, vector<1x16x8xf32>
    %99 = vector.shape_cast %98 : vector<1x16x8xf32> to vector<16x8xf32>
    %100 = vector.extract_strided_slice %1 {offsets = [0, 33], sizes = [8, 128], strides = [1, 1]} : vector<8x256xf32> to vector<8x128xf32>
    %cst_62 = arith.constant dense<0.000000e+00> : vector<16x128xf32>
    %101 = tpu.matmul %99, %100, %cst_62 {dimension_numbers = #tpu.dot_dimension_numbers<[1], [0], [0], [1], [0, 0, 1, 1], [], []>} : vector<16x8xf32>, vector<8x128xf32>, vector<16x128xf32> -> vector<16x128xf32>
    %102 = arith.addf %97, %101 : vector<16x128xf32>
    %c20 = arith.constant 20 : index
    %c0_63 = arith.constant 0 : index
    %c0_64 = arith.constant 0 : index
    %103 = vector.load %arg2[%c20, %c0_63, %c0_64] : memref<49x16x8xf32, #tpu.memory_space<vmem>>, vector<1x16x8xf32>
    %104 = vector.shape_cast %103 : vector<1x16x8xf32> to vector<16x8xf32>
    %105 = vector.extract_strided_slice %1 {offsets = [0, 34], sizes = [8, 128], strides = [1, 1]} : vector<8x256xf32> to vector<8x128xf32>
    %cst_65 = arith.constant dense<0.000000e+00> : vector<16x128xf32>
    %106 = tpu.matmul %104, %105, %cst_65 {dimension_numbers = #tpu.dot_dimension_numbers<[1], [0], [0], [1], [0, 0, 1, 1], [], []>} : vector<16x8xf32>, vector<8x128xf32>, vector<16x128xf32> -> vector<16x128xf32>
    %107 = arith.addf %102, %106 : vector<16x128xf32>
    %c21 = arith.constant 21 : index
    %c0_66 = arith.constant 0 : index
    %c0_67 = arith.constant 0 : index
    %108 = vector.load %arg2[%c21, %c0_66, %c0_67] : memref<49x16x8xf32, #tpu.memory_space<vmem>>, vector<1x16x8xf32>
    %109 = vector.shape_cast %108 : vector<1x16x8xf32> to vector<16x8xf32>
    %110 = vector.extract_strided_slice %1 {offsets = [0, 42], sizes = [8, 128], strides = [1, 1]} : vector<8x256xf32> to vector<8x128xf32>
    %cst_68 = arith.constant dense<0.000000e+00> : vector<16x128xf32>
    %111 = tpu.matmul %109, %110, %cst_68 {dimension_numbers = #tpu.dot_dimension_numbers<[1], [0], [0], [1], [0, 0, 1, 1], [], []>} : vector<16x8xf32>, vector<8x128xf32>, vector<16x128xf32> -> vector<16x128xf32>
    %112 = arith.addf %107, %111 : vector<16x128xf32>
    %c22 = arith.constant 22 : index
    %c0_69 = arith.constant 0 : index
    %c0_70 = arith.constant 0 : index
    %113 = vector.load %arg2[%c22, %c0_69, %c0_70] : memref<49x16x8xf32, #tpu.memory_space<vmem>>, vector<1x16x8xf32>
    %114 = vector.shape_cast %113 : vector<1x16x8xf32> to vector<16x8xf32>
    %115 = vector.extract_strided_slice %1 {offsets = [0, 43], sizes = [8, 128], strides = [1, 1]} : vector<8x256xf32> to vector<8x128xf32>
    %cst_71 = arith.constant dense<0.000000e+00> : vector<16x128xf32>
    %116 = tpu.matmul %114, %115, %cst_71 {dimension_numbers = #tpu.dot_dimension_numbers<[1], [0], [0], [1], [0, 0, 1, 1], [], []>} : vector<16x8xf32>, vector<8x128xf32>, vector<16x128xf32> -> vector<16x128xf32>
    %117 = arith.addf %112, %116 : vector<16x128xf32>
    %c23 = arith.constant 23 : index
    %c0_72 = arith.constant 0 : index
    %c0_73 = arith.constant 0 : index
    %118 = vector.load %arg2[%c23, %c0_72, %c0_73] : memref<49x16x8xf32, #tpu.memory_space<vmem>>, vector<1x16x8xf32>
    %119 = vector.shape_cast %118 : vector<1x16x8xf32> to vector<16x8xf32>
    %120 = vector.extract_strided_slice %1 {offsets = [0, 44], sizes = [8, 128], strides = [1, 1]} : vector<8x256xf32> to vector<8x128xf32>
    %cst_74 = arith.constant dense<0.000000e+00> : vector<16x128xf32>
    %121 = tpu.matmul %119, %120, %cst_74 {dimension_numbers = #tpu.dot_dimension_numbers<[1], [0], [0], [1], [0, 0, 1, 1], [], []>} : vector<16x8xf32>, vector<8x128xf32>, vector<16x128xf32> -> vector<16x128xf32>
    %122 = arith.addf %117, %121 : vector<16x128xf32>
    %c24 = arith.constant 24 : index
    %c0_75 = arith.constant 0 : index
    %c0_76 = arith.constant 0 : index
    %123 = vector.load %arg2[%c24, %c0_75, %c0_76] : memref<49x16x8xf32, #tpu.memory_space<vmem>>, vector<1x16x8xf32>
    %124 = vector.shape_cast %123 : vector<1x16x8xf32> to vector<16x8xf32>
    %125 = vector.extract_strided_slice %1 {offsets = [0, 45], sizes = [8, 128], strides = [1, 1]} : vector<8x256xf32> to vector<8x128xf32>
    %cst_77 = arith.constant dense<0.000000e+00> : vector<16x128xf32>
    %126 = tpu.matmul %124, %125, %cst_77 {dimension_numbers = #tpu.dot_dimension_numbers<[1], [0], [0], [1], [0, 0, 1, 1], [], []>} : vector<16x8xf32>, vector<8x128xf32>, vector<16x128xf32> -> vector<16x128xf32>
    %127 = arith.addf %122, %126 : vector<16x128xf32>
    %c25 = arith.constant 25 : index
    %c0_78 = arith.constant 0 : index
    %c0_79 = arith.constant 0 : index
    %128 = vector.load %arg2[%c25, %c0_78, %c0_79] : memref<49x16x8xf32, #tpu.memory_space<vmem>>, vector<1x16x8xf32>
    %129 = vector.shape_cast %128 : vector<1x16x8xf32> to vector<16x8xf32>
    %130 = vector.extract_strided_slice %1 {offsets = [0, 46], sizes = [8, 128], strides = [1, 1]} : vector<8x256xf32> to vector<8x128xf32>
    %cst_80 = arith.constant dense<0.000000e+00> : vector<16x128xf32>
    %131 = tpu.matmul %129, %130, %cst_80 {dimension_numbers = #tpu.dot_dimension_numbers<[1], [0], [0], [1], [0, 0, 1, 1], [], []>} : vector<16x8xf32>, vector<8x128xf32>, vector<16x128xf32> -> vector<16x128xf32>
    %132 = arith.addf %127, %131 : vector<16x128xf32>
    %c26 = arith.constant 26 : index
    %c0_81 = arith.constant 0 : index
    %c0_82 = arith.constant 0 : index
    %133 = vector.load %arg2[%c26, %c0_81, %c0_82] : memref<49x16x8xf32, #tpu.memory_space<vmem>>, vector<1x16x8xf32>
    %134 = vector.shape_cast %133 : vector<1x16x8xf32> to vector<16x8xf32>
    %135 = vector.extract_strided_slice %1 {offsets = [0, 47], sizes = [8, 128], strides = [1, 1]} : vector<8x256xf32> to vector<8x128xf32>
    %cst_83 = arith.constant dense<0.000000e+00> : vector<16x128xf32>
    %136 = tpu.matmul %134, %135, %cst_83 {dimension_numbers = #tpu.dot_dimension_numbers<[1], [0], [0], [1], [0, 0, 1, 1], [], []>} : vector<16x8xf32>, vector<8x128xf32>, vector<16x128xf32> -> vector<16x128xf32>
    %137 = arith.addf %132, %136 : vector<16x128xf32>
    %c27 = arith.constant 27 : index
    %c0_84 = arith.constant 0 : index
    %c0_85 = arith.constant 0 : index
    %138 = vector.load %arg2[%c27, %c0_84, %c0_85] : memref<49x16x8xf32, #tpu.memory_space<vmem>>, vector<1x16x8xf32>
    %139 = vector.shape_cast %138 : vector<1x16x8xf32> to vector<16x8xf32>
    %140 = vector.extract_strided_slice %1 {offsets = [0, 48], sizes = [8, 128], strides = [1, 1]} : vector<8x256xf32> to vector<8x128xf32>
    %cst_86 = arith.constant dense<0.000000e+00> : vector<16x128xf32>
    %141 = tpu.matmul %139, %140, %cst_86 {dimension_numbers = #tpu.dot_dimension_numbers<[1], [0], [0], [1], [0, 0, 1, 1], [], []>} : vector<16x8xf32>, vector<8x128xf32>, vector<16x128xf32> -> vector<16x128xf32>
    %142 = arith.addf %137, %141 : vector<16x128xf32>
    %c28 = arith.constant 28 : index
    %c0_87 = arith.constant 0 : index
    %c0_88 = arith.constant 0 : index
    %143 = vector.load %arg2[%c28, %c0_87, %c0_88] : memref<49x16x8xf32, #tpu.memory_space<vmem>>, vector<1x16x8xf32>
    %144 = vector.shape_cast %143 : vector<1x16x8xf32> to vector<16x8xf32>
    %145 = vector.extract_strided_slice %1 {offsets = [0, 56], sizes = [8, 128], strides = [1, 1]} : vector<8x256xf32> to vector<8x128xf32>
    %cst_89 = arith.constant dense<0.000000e+00> : vector<16x128xf32>
    %146 = tpu.matmul %144, %145, %cst_89 {dimension_numbers = #tpu.dot_dimension_numbers<[1], [0], [0], [1], [0, 0, 1, 1], [], []>} : vector<16x8xf32>, vector<8x128xf32>, vector<16x128xf32> -> vector<16x128xf32>
    %147 = arith.addf %142, %146 : vector<16x128xf32>
    %c29 = arith.constant 29 : index
    %c0_90 = arith.constant 0 : index
    %c0_91 = arith.constant 0 : index
    %148 = vector.load %arg2[%c29, %c0_90, %c0_91] : memref<49x16x8xf32, #tpu.memory_space<vmem>>, vector<1x16x8xf32>
    %149 = vector.shape_cast %148 : vector<1x16x8xf32> to vector<16x8xf32>
    %150 = vector.extract_strided_slice %1 {offsets = [0, 57], sizes = [8, 128], strides = [1, 1]} : vector<8x256xf32> to vector<8x128xf32>
    %cst_92 = arith.constant dense<0.000000e+00> : vector<16x128xf32>
    %151 = tpu.matmul %149, %150, %cst_92 {dimension_numbers = #tpu.dot_dimension_numbers<[1], [0], [0], [1], [0, 0, 1, 1], [], []>} : vector<16x8xf32>, vector<8x128xf32>, vector<16x128xf32> -> vector<16x128xf32>
    %152 = arith.addf %147, %151 : vector<16x128xf32>
    %c30 = arith.constant 30 : index
    %c0_93 = arith.constant 0 : index
    %c0_94 = arith.constant 0 : index
    %153 = vector.load %arg2[%c30, %c0_93, %c0_94] : memref<49x16x8xf32, #tpu.memory_space<vmem>>, vector<1x16x8xf32>
    %154 = vector.shape_cast %153 : vector<1x16x8xf32> to vector<16x8xf32>
    %155 = vector.extract_strided_slice %1 {offsets = [0, 58], sizes = [8, 128], strides = [1, 1]} : vector<8x256xf32> to vector<8x128xf32>
    %cst_95 = arith.constant dense<0.000000e+00> : vector<16x128xf32>
    %156 = tpu.matmul %154, %155, %cst_95 {dimension_numbers = #tpu.dot_dimension_numbers<[1], [0], [0], [1], [0, 0, 1, 1], [], []>} : vector<16x8xf32>, vector<8x128xf32>, vector<16x128xf32> -> vector<16x128xf32>
    %157 = arith.addf %152, %156 : vector<16x128xf32>
    %c31 = arith.constant 31 : index
    %c0_96 = arith.constant 0 : index
    %c0_97 = arith.constant 0 : index
    %158 = vector.load %arg2[%c31, %c0_96, %c0_97] : memref<49x16x8xf32, #tpu.memory_space<vmem>>, vector<1x16x8xf32>
    %159 = vector.shape_cast %158 : vector<1x16x8xf32> to vector<16x8xf32>
    %160 = vector.extract_strided_slice %1 {offsets = [0, 59], sizes = [8, 128], strides = [1, 1]} : vector<8x256xf32> to vector<8x128xf32>
    %cst_98 = arith.constant dense<0.000000e+00> : vector<16x128xf32>
    %161 = tpu.matmul %159, %160, %cst_98 {dimension_numbers = #tpu.dot_dimension_numbers<[1], [0], [0], [1], [0, 0, 1, 1], [], []>} : vector<16x8xf32>, vector<8x128xf32>, vector<16x128xf32> -> vector<16x128xf32>
    %162 = arith.addf %157, %161 : vector<16x128xf32>
    %c32 = arith.constant 32 : index
    %c0_99 = arith.constant 0 : index
    %c0_100 = arith.constant 0 : index
    %163 = vector.load %arg2[%c32, %c0_99, %c0_100] : memref<49x16x8xf32, #tpu.memory_space<vmem>>, vector<1x16x8xf32>
    %164 = vector.shape_cast %163 : vector<1x16x8xf32> to vector<16x8xf32>
    %165 = vector.extract_strided_slice %1 {offsets = [0, 60], sizes = [8, 128], strides = [1, 1]} : vector<8x256xf32> to vector<8x128xf32>
    %cst_101 = arith.constant dense<0.000000e+00> : vector<16x128xf32>
    %166 = tpu.matmul %164, %165, %cst_101 {dimension_numbers = #tpu.dot_dimension_numbers<[1], [0], [0], [1], [0, 0, 1, 1], [], []>} : vector<16x8xf32>, vector<8x128xf32>, vector<16x128xf32> -> vector<16x128xf32>
    %167 = arith.addf %162, %166 : vector<16x128xf32>
    %c33 = arith.constant 33 : index
    %c0_102 = arith.constant 0 : index
    %c0_103 = arith.constant 0 : index
    %168 = vector.load %arg2[%c33, %c0_102, %c0_103] : memref<49x16x8xf32, #tpu.memory_space<vmem>>, vector<1x16x8xf32>
    %169 = vector.shape_cast %168 : vector<1x16x8xf32> to vector<16x8xf32>
    %170 = vector.extract_strided_slice %1 {offsets = [0, 61], sizes = [8, 128], strides = [1, 1]} : vector<8x256xf32> to vector<8x128xf32>
    %cst_104 = arith.constant dense<0.000000e+00> : vector<16x128xf32>
    %171 = tpu.matmul %169, %170, %cst_104 {dimension_numbers = #tpu.dot_dimension_numbers<[1], [0], [0], [1], [0, 0, 1, 1], [], []>} : vector<16x8xf32>, vector<8x128xf32>, vector<16x128xf32> -> vector<16x128xf32>
    %172 = arith.addf %167, %171 : vector<16x128xf32>
    %c34 = arith.constant 34 : index
    %c0_105 = arith.constant 0 : index
    %c0_106 = arith.constant 0 : index
    %173 = vector.load %arg2[%c34, %c0_105, %c0_106] : memref<49x16x8xf32, #tpu.memory_space<vmem>>, vector<1x16x8xf32>
    %174 = vector.shape_cast %173 : vector<1x16x8xf32> to vector<16x8xf32>
    %175 = vector.extract_strided_slice %1 {offsets = [0, 62], sizes = [8, 128], strides = [1, 1]} : vector<8x256xf32> to vector<8x128xf32>
    %cst_107 = arith.constant dense<0.000000e+00> : vector<16x128xf32>
    %176 = tpu.matmul %174, %175, %cst_107 {dimension_numbers = #tpu.dot_dimension_numbers<[1], [0], [0], [1], [0, 0, 1, 1], [], []>} : vector<16x8xf32>, vector<8x128xf32>, vector<16x128xf32> -> vector<16x128xf32>
    %177 = arith.addf %172, %176 : vector<16x128xf32>
    %c35 = arith.constant 35 : index
    %c0_108 = arith.constant 0 : index
    %c0_109 = arith.constant 0 : index
    %178 = vector.load %arg2[%c35, %c0_108, %c0_109] : memref<49x16x8xf32, #tpu.memory_space<vmem>>, vector<1x16x8xf32>
    %179 = vector.shape_cast %178 : vector<1x16x8xf32> to vector<16x8xf32>
    %180 = vector.extract_strided_slice %1 {offsets = [0, 70], sizes = [8, 128], strides = [1, 1]} : vector<8x256xf32> to vector<8x128xf32>
    %cst_110 = arith.constant dense<0.000000e+00> : vector<16x128xf32>
    %181 = tpu.matmul %179, %180, %cst_110 {dimension_numbers = #tpu.dot_dimension_numbers<[1], [0], [0], [1], [0, 0, 1, 1], [], []>} : vector<16x8xf32>, vector<8x128xf32>, vector<16x128xf32> -> vector<16x128xf32>
    %182 = arith.addf %177, %181 : vector<16x128xf32>
    %c36 = arith.constant 36 : index
    %c0_111 = arith.constant 0 : index
    %c0_112 = arith.constant 0 : index
    %183 = vector.load %arg2[%c36, %c0_111, %c0_112] : memref<49x16x8xf32, #tpu.memory_space<vmem>>, vector<1x16x8xf32>
    %184 = vector.shape_cast %183 : vector<1x16x8xf32> to vector<16x8xf32>
    %185 = vector.extract_strided_slice %1 {offsets = [0, 71], sizes = [8, 128], strides = [1, 1]} : vector<8x256xf32> to vector<8x128xf32>
    %cst_113 = arith.constant dense<0.000000e+00> : vector<16x128xf32>
    %186 = tpu.matmul %184, %185, %cst_113 {dimension_numbers = #tpu.dot_dimension_numbers<[1], [0], [0], [1], [0, 0, 1, 1], [], []>} : vector<16x8xf32>, vector<8x128xf32>, vector<16x128xf32> -> vector<16x128xf32>
    %187 = arith.addf %182, %186 : vector<16x128xf32>
    %c37 = arith.constant 37 : index
    %c0_114 = arith.constant 0 : index
    %c0_115 = arith.constant 0 : index
    %188 = vector.load %arg2[%c37, %c0_114, %c0_115] : memref<49x16x8xf32, #tpu.memory_space<vmem>>, vector<1x16x8xf32>
    %189 = vector.shape_cast %188 : vector<1x16x8xf32> to vector<16x8xf32>
    %190 = vector.extract_strided_slice %1 {offsets = [0, 72], sizes = [8, 128], strides = [1, 1]} : vector<8x256xf32> to vector<8x128xf32>
    %cst_116 = arith.constant dense<0.000000e+00> : vector<16x128xf32>
    %191 = tpu.matmul %189, %190, %cst_116 {dimension_numbers = #tpu.dot_dimension_numbers<[1], [0], [0], [1], [0, 0, 1, 1], [], []>} : vector<16x8xf32>, vector<8x128xf32>, vector<16x128xf32> -> vector<16x128xf32>
    %192 = arith.addf %187, %191 : vector<16x128xf32>
    %c38 = arith.constant 38 : index
    %c0_117 = arith.constant 0 : index
    %c0_118 = arith.constant 0 : index
    %193 = vector.load %arg2[%c38, %c0_117, %c0_118] : memref<49x16x8xf32, #tpu.memory_space<vmem>>, vector<1x16x8xf32>
    %194 = vector.shape_cast %193 : vector<1x16x8xf32> to vector<16x8xf32>
    %195 = vector.extract_strided_slice %1 {offsets = [0, 73], sizes = [8, 128], strides = [1, 1]} : vector<8x256xf32> to vector<8x128xf32>
    %cst_119 = arith.constant dense<0.000000e+00> : vector<16x128xf32>
    %196 = tpu.matmul %194, %195, %cst_119 {dimension_numbers = #tpu.dot_dimension_numbers<[1], [0], [0], [1], [0, 0, 1, 1], [], []>} : vector<16x8xf32>, vector<8x128xf32>, vector<16x128xf32> -> vector<16x128xf32>
    %197 = arith.addf %192, %196 : vector<16x128xf32>
    %c39 = arith.constant 39 : index
    %c0_120 = arith.constant 0 : index
    %c0_121 = arith.constant 0 : index
    %198 = vector.load %arg2[%c39, %c0_120, %c0_121] : memref<49x16x8xf32, #tpu.memory_space<vmem>>, vector<1x16x8xf32>
    %199 = vector.shape_cast %198 : vector<1x16x8xf32> to vector<16x8xf32>
    %200 = vector.extract_strided_slice %1 {offsets = [0, 74], sizes = [8, 128], strides = [1, 1]} : vector<8x256xf32> to vector<8x128xf32>
    %cst_122 = arith.constant dense<0.000000e+00> : vector<16x128xf32>
    %201 = tpu.matmul %199, %200, %cst_122 {dimension_numbers = #tpu.dot_dimension_numbers<[1], [0], [0], [1], [0, 0, 1, 1], [], []>} : vector<16x8xf32>, vector<8x128xf32>, vector<16x128xf32> -> vector<16x128xf32>
    %202 = arith.addf %197, %201 : vector<16x128xf32>
    %c40 = arith.constant 40 : index
    %c0_123 = arith.constant 0 : index
    %c0_124 = arith.constant 0 : index
    %203 = vector.load %arg2[%c40, %c0_123, %c0_124] : memref<49x16x8xf32, #tpu.memory_space<vmem>>, vector<1x16x8xf32>
    %204 = vector.shape_cast %203 : vector<1x16x8xf32> to vector<16x8xf32>
    %205 = vector.extract_strided_slice %1 {offsets = [0, 75], sizes = [8, 128], strides = [1, 1]} : vector<8x256xf32> to vector<8x128xf32>
    %cst_125 = arith.constant dense<0.000000e+00> : vector<16x128xf32>
    %206 = tpu.matmul %204, %205, %cst_125 {dimension_numbers = #tpu.dot_dimension_numbers<[1], [0], [0], [1], [0, 0, 1, 1], [], []>} : vector<16x8xf32>, vector<8x128xf32>, vector<16x128xf32> -> vector<16x128xf32>
    %207 = arith.addf %202, %206 : vector<16x128xf32>
    %c41 = arith.constant 41 : index
    %c0_126 = arith.constant 0 : index
    %c0_127 = arith.constant 0 : index
    %208 = vector.load %arg2[%c41, %c0_126, %c0_127] : memref<49x16x8xf32, #tpu.memory_space<vmem>>, vector<1x16x8xf32>
    %209 = vector.shape_cast %208 : vector<1x16x8xf32> to vector<16x8xf32>
    %210 = vector.extract_strided_slice %1 {offsets = [0, 76], sizes = [8, 128], strides = [1, 1]} : vector<8x256xf32> to vector<8x128xf32>
    %cst_128 = arith.constant dense<0.000000e+00> : vector<16x128xf32>
    %211 = tpu.matmul %209, %210, %cst_128 {dimension_numbers = #tpu.dot_dimension_numbers<[1], [0], [0], [1], [0, 0, 1, 1], [], []>} : vector<16x8xf32>, vector<8x128xf32>, vector<16x128xf32> -> vector<16x128xf32>
    %212 = arith.addf %207, %211 : vector<16x128xf32>
    %c42 = arith.constant 42 : index
    %c0_129 = arith.constant 0 : index
    %c0_130 = arith.constant 0 : index
    %213 = vector.load %arg2[%c42, %c0_129, %c0_130] : memref<49x16x8xf32, #tpu.memory_space<vmem>>, vector<1x16x8xf32>
    %214 = vector.shape_cast %213 : vector<1x16x8xf32> to vector<16x8xf32>
    %215 = vector.extract_strided_slice %1 {offsets = [0, 84], sizes = [8, 128], strides = [1, 1]} : vector<8x256xf32> to vector<8x128xf32>
    %cst_131 = arith.constant dense<0.000000e+00> : vector<16x128xf32>
    %216 = tpu.matmul %214, %215, %cst_131 {dimension_numbers = #tpu.dot_dimension_numbers<[1], [0], [0], [1], [0, 0, 1, 1], [], []>} : vector<16x8xf32>, vector<8x128xf32>, vector<16x128xf32> -> vector<16x128xf32>
    %217 = arith.addf %212, %216 : vector<16x128xf32>
    %c43 = arith.constant 43 : index
    %c0_132 = arith.constant 0 : index
    %c0_133 = arith.constant 0 : index
    %218 = vector.load %arg2[%c43, %c0_132, %c0_133] : memref<49x16x8xf32, #tpu.memory_space<vmem>>, vector<1x16x8xf32>
    %219 = vector.shape_cast %218 : vector<1x16x8xf32> to vector<16x8xf32>
    %220 = vector.extract_strided_slice %1 {offsets = [0, 85], sizes = [8, 128], strides = [1, 1]} : vector<8x256xf32> to vector<8x128xf32>
    %cst_134 = arith.constant dense<0.000000e+00> : vector<16x128xf32>
    %221 = tpu.matmul %219, %220, %cst_134 {dimension_numbers = #tpu.dot_dimension_numbers<[1], [0], [0], [1], [0, 0, 1, 1], [], []>} : vector<16x8xf32>, vector<8x128xf32>, vector<16x128xf32> -> vector<16x128xf32>
    %222 = arith.addf %217, %221 : vector<16x128xf32>
    %c44 = arith.constant 44 : index
    %c0_135 = arith.constant 0 : index
    %c0_136 = arith.constant 0 : index
    %223 = vector.load %arg2[%c44, %c0_135, %c0_136] : memref<49x16x8xf32, #tpu.memory_space<vmem>>, vector<1x16x8xf32>
    %224 = vector.shape_cast %223 : vector<1x16x8xf32> to vector<16x8xf32>
    %225 = vector.extract_strided_slice %1 {offsets = [0, 86], sizes = [8, 128], strides = [1, 1]} : vector<8x256xf32> to vector<8x128xf32>
    %cst_137 = arith.constant dense<0.000000e+00> : vector<16x128xf32>
    %226 = tpu.matmul %224, %225, %cst_137 {dimension_numbers = #tpu.dot_dimension_numbers<[1], [0], [0], [1], [0, 0, 1, 1], [], []>} : vector<16x8xf32>, vector<8x128xf32>, vector<16x128xf32> -> vector<16x128xf32>
    %227 = arith.addf %222, %226 : vector<16x128xf32>
    %c45 = arith.constant 45 : index
    %c0_138 = arith.constant 0 : index
    %c0_139 = arith.constant 0 : index
    %228 = vector.load %arg2[%c45, %c0_138, %c0_139] : memref<49x16x8xf32, #tpu.memory_space<vmem>>, vector<1x16x8xf32>
    %229 = vector.shape_cast %228 : vector<1x16x8xf32> to vector<16x8xf32>
    %230 = vector.extract_strided_slice %1 {offsets = [0, 87], sizes = [8, 128], strides = [1, 1]} : vector<8x256xf32> to vector<8x128xf32>
    %cst_140 = arith.constant dense<0.000000e+00> : vector<16x128xf32>
    %231 = tpu.matmul %229, %230, %cst_140 {dimension_numbers = #tpu.dot_dimension_numbers<[1], [0], [0], [1], [0, 0, 1, 1], [], []>} : vector<16x8xf32>, vector<8x128xf32>, vector<16x128xf32> -> vector<16x128xf32>
    %232 = arith.addf %227, %231 : vector<16x128xf32>
    %c46 = arith.constant 46 : index
    %c0_141 = arith.constant 0 : index
    %c0_142 = arith.constant 0 : index
    %233 = vector.load %arg2[%c46, %c0_141, %c0_142] : memref<49x16x8xf32, #tpu.memory_space<vmem>>, vector<1x16x8xf32>
    %234 = vector.shape_cast %233 : vector<1x16x8xf32> to vector<16x8xf32>
    %235 = vector.extract_strided_slice %1 {offsets = [0, 88], sizes = [8, 128], strides = [1, 1]} : vector<8x256xf32> to vector<8x128xf32>
    %cst_143 = arith.constant dense<0.000000e+00> : vector<16x128xf32>
    %236 = tpu.matmul %234, %235, %cst_143 {dimension_numbers = #tpu.dot_dimension_numbers<[1], [0], [0], [1], [0, 0, 1, 1], [], []>} : vector<16x8xf32>, vector<8x128xf32>, vector<16x128xf32> -> vector<16x128xf32>
    %237 = arith.addf %232, %236 : vector<16x128xf32>
    %c47 = arith.constant 47 : index
    %c0_144 = arith.constant 0 : index
    %c0_145 = arith.constant 0 : index
    %238 = vector.load %arg2[%c47, %c0_144, %c0_145] : memref<49x16x8xf32, #tpu.memory_space<vmem>>, vector<1x16x8xf32>
    %239 = vector.shape_cast %238 : vector<1x16x8xf32> to vector<16x8xf32>
    %240 = vector.extract_strided_slice %1 {offsets = [0, 89], sizes = [8, 128], strides = [1, 1]} : vector<8x256xf32> to vector<8x128xf32>
    %cst_146 = arith.constant dense<0.000000e+00> : vector<16x128xf32>
    %241 = tpu.matmul %239, %240, %cst_146 {dimension_numbers = #tpu.dot_dimension_numbers<[1], [0], [0], [1], [0, 0, 1, 1], [], []>} : vector<16x8xf32>, vector<8x128xf32>, vector<16x128xf32> -> vector<16x128xf32>
    %242 = arith.addf %237, %241 : vector<16x128xf32>
    %c48 = arith.constant 48 : index
    %c0_147 = arith.constant 0 : index
    %c0_148 = arith.constant 0 : index
    %243 = vector.load %arg2[%c48, %c0_147, %c0_148] : memref<49x16x8xf32, #tpu.memory_space<vmem>>, vector<1x16x8xf32>
    %244 = vector.shape_cast %243 : vector<1x16x8xf32> to vector<16x8xf32>
    %245 = vector.extract_strided_slice %1 {offsets = [0, 90], sizes = [8, 128], strides = [1, 1]} : vector<8x256xf32> to vector<8x128xf32>
    %cst_149 = arith.constant dense<0.000000e+00> : vector<16x128xf32>
    %246 = tpu.matmul %244, %245, %cst_149 {dimension_numbers = #tpu.dot_dimension_numbers<[1], [0], [0], [1], [0, 0, 1, 1], [], []>} : vector<16x8xf32>, vector<8x128xf32>, vector<16x128xf32> -> vector<16x128xf32>
    %247 = arith.addf %242, %246 : vector<16x128xf32>
    %c0_150 = arith.constant 0 : index
    %c0_151 = arith.constant 0 : index
    %248 = vector.load %arg3[%c0_150, %c0_151] : memref<16x1xf32, #tpu.memory_space<vmem>>, vector<16x1xf32>
    %249 = vector.broadcast %248 : vector<16x1xf32> to vector<16x128xf32>
    %250 = arith.addf %247, %249 : vector<16x128xf32>
    %cst_152 = arith.constant 0.000000e+00 : f32
    %251 = vector.broadcast %cst_152 : f32 to vector<16x128xf32>
    %252 = arith.maximumf %250, %251 : vector<16x128xf32>
    %253 = arith.negf %252 : vector<16x128xf32>
    %254 = math.exp %253 : vector<16x128xf32>
    %cst_153 = arith.constant 1.000000e+00 : f32
    %255 = vector.broadcast %cst_153 : f32 to vector<16x128xf32>
    %256 = arith.addf %255, %254 : vector<16x128xf32>
    %257 = arith.divf %255, %256 : vector<16x128xf32>
    %258 = math.tanh %257 : vector<16x128xf32>
    %259 = math.tanh %258 : vector<16x128xf32>
    %260 = vector.extract_strided_slice %259 {offsets = [0, 0], sizes = [16, 8], strides = [1, 1]} : vector<16x128xf32> to vector<16x8xf32>
    %c0_154 = arith.constant 0 : index
    %c0_155 = arith.constant 0 : index
    %261 = vector.load %arg5[%c0_154, %c0_155] : memref<16x64xf32, #tpu.memory_space<vmem>>, vector<16x8xf32>
    tpu.vector_store %arg5[%c0_154, %c0_155], %260 {strides = array<i32>} : memref<16x64xf32, #tpu.memory_space<vmem>>, vector<16x8xf32>,
    %262 = vector.extract_strided_slice %259 {offsets = [0, 14], sizes = [16, 8], strides = [1, 1]} : vector<16x128xf32> to vector<16x8xf32>
    %c0_156 = arith.constant 0 : index
    %c8_157 = arith.constant 8 : index
    %263 = vector.load %arg5[%c0_156, %c8_157] : memref<16x64xf32, #tpu.memory_space<vmem>>, vector<16x8xf32>
    tpu.vector_store %arg5[%c0_156, %c8_157], %262 {strides = array<i32>} : memref<16x64xf32, #tpu.memory_space<vmem>>, vector<16x8xf32>,
    %264 = vector.extract_strided_slice %259 {offsets = [0, 28], sizes = [16, 8], strides = [1, 1]} : vector<16x128xf32> to vector<16x8xf32>
    %c0_158 = arith.constant 0 : index
    %c16_159 = arith.constant 16 : index
    %265 = vector.load %arg5[%c0_158, %c16_159] : memref<16x64xf32, #tpu.memory_space<vmem>>, vector<16x8xf32>
    tpu.vector_store %arg5[%c0_158, %c16_159], %264 {strides = array<i32>} : memref<16x64xf32, #tpu.memory_space<vmem>>, vector<16x8xf32>,
    %266 = vector.extract_strided_slice %259 {offsets = [0, 42], sizes = [16, 8], strides = [1, 1]} : vector<16x128xf32> to vector<16x8xf32>
    %c0_160 = arith.constant 0 : index
    %c24_161 = arith.constant 24 : index
    %267 = vector.load %arg5[%c0_160, %c24_161] : memref<16x64xf32, #tpu.memory_space<vmem>>, vector<16x8xf32>
    tpu.vector_store %arg5[%c0_160, %c24_161], %266 {strides = array<i32>} : memref<16x64xf32, #tpu.memory_space<vmem>>, vector<16x8xf32>,
    %268 = vector.extract_strided_slice %259 {offsets = [0, 56], sizes = [16, 8], strides = [1, 1]} : vector<16x128xf32> to vector<16x8xf32>
    %c0_162 = arith.constant 0 : index
    %c32_163 = arith.constant 32 : index
    %269 = vector.load %arg5[%c0_162, %c32_163] : memref<16x64xf32, #tpu.memory_space<vmem>>, vector<16x8xf32>
    tpu.vector_store %arg5[%c0_162, %c32_163], %268 {strides = array<i32>} : memref<16x64xf32, #tpu.memory_space<vmem>>, vector<16x8xf32>,
    %270 = vector.extract_strided_slice %259 {offsets = [0, 70], sizes = [16, 8], strides = [1, 1]} : vector<16x128xf32> to vector<16x8xf32>
    %c0_164 = arith.constant 0 : index
    %c40_165 = arith.constant 40 : index
    %271 = vector.load %arg5[%c0_164, %c40_165] : memref<16x64xf32, #tpu.memory_space<vmem>>, vector<16x8xf32>
    tpu.vector_store %arg5[%c0_164, %c40_165], %270 {strides = array<i32>} : memref<16x64xf32, #tpu.memory_space<vmem>>, vector<16x8xf32>,
    %272 = vector.extract_strided_slice %259 {offsets = [0, 84], sizes = [16, 8], strides = [1, 1]} : vector<16x128xf32> to vector<16x8xf32>
    %c0_166 = arith.constant 0 : index
    %c48_167 = arith.constant 48 : index
    %273 = vector.load %arg5[%c0_166, %c48_167] : memref<16x64xf32, #tpu.memory_space<vmem>>, vector<16x8xf32>
    tpu.vector_store %arg5[%c0_166, %c48_167], %272 {strides = array<i32>} : memref<16x64xf32, #tpu.memory_space<vmem>>, vector<16x8xf32>,
    %274 = vector.extract_strided_slice %259 {offsets = [0, 98], sizes = [16, 8], strides = [1, 1]} : vector<16x128xf32> to vector<16x8xf32>
    %c0_168 = arith.constant 0 : index
    %c56 = arith.constant 56 : index
    %275 = vector.load %arg5[%c0_168, %c56] : memref<16x64xf32, #tpu.memory_space<vmem>>, vector<16x8xf32>
    tpu.vector_store %arg5[%c0_168, %c56], %274 {strides = array<i32>} : memref<16x64xf32, #tpu.memory_space<vmem>>, vector<16x8xf32>,
    %c0_169 = arith.constant 0 : index
    %c0_170 = arith.constant 0 : index
    %276 = vector.load %arg5[%c0_169, %c0_170] : memref<16x64xf32, #tpu.memory_space<vmem>>, vector<1x64xf32>
    %c0_171 = arith.constant 0 : index
    %c0_172 = arith.constant 0 : index
    %277 = vector.load %arg4[%c0_171, %c0_172] : memref<1x1024xf32, #tpu.memory_space<vmem>>, vector<1x64xf32>
    tpu.vector_store %arg4[%c0_171, %c0_172], %276 {strides = array<i32>} : memref<1x1024xf32, #tpu.memory_space<vmem>>, vector<1x64xf32>,
    %c1_173 = arith.constant 1 : index
    %c0_174 = arith.constant 0 : index
    %278 = vector.load %arg5[%c1_173, %c0_174] : memref<16x64xf32, #tpu.memory_space<vmem>>, vector<1x64xf32>
    %c0_175 = arith.constant 0 : index
    %c64 = arith.constant 64 : index
    %279 = vector.load %arg4[%c0_175, %c64] : memref<1x1024xf32, #tpu.memory_space<vmem>>, vector<1x64xf32>
    tpu.vector_store %arg4[%c0_175, %c64], %278 {strides = array<i32>} : memref<1x1024xf32, #tpu.memory_space<vmem>>, vector<1x64xf32>,
    %c2_176 = arith.constant 2 : index
    %c0_177 = arith.constant 0 : index
    %280 = vector.load %arg5[%c2_176, %c0_177] : memref<16x64xf32, #tpu.memory_space<vmem>>, vector<1x64xf32>
    %c0_178 = arith.constant 0 : index
    %c128 = arith.constant 128 : index
    %281 = vector.load %arg4[%c0_178, %c128] : memref<1x1024xf32, #tpu.memory_space<vmem>>, vector<1x64xf32>
    tpu.vector_store %arg4[%c0_178, %c128], %280 {strides = array<i32>} : memref<1x1024xf32, #tpu.memory_space<vmem>>, vector<1x64xf32>,
    %c3_179 = arith.constant 3 : index
    %c0_180 = arith.constant 0 : index
    %282 = vector.load %arg5[%c3_179, %c0_180] : memref<16x64xf32, #tpu.memory_space<vmem>>, vector<1x64xf32>
    %c0_181 = arith.constant 0 : index
    %c192 = arith.constant 192 : index
    %283 = vector.load %arg4[%c0_181, %c192] : memref<1x1024xf32, #tpu.memory_space<vmem>>, vector<1x64xf32>
    tpu.vector_store %arg4[%c0_181, %c192], %282 {strides = array<i32>} : memref<1x1024xf32, #tpu.memory_space<vmem>>, vector<1x64xf32>,
    %c4_182 = arith.constant 4 : index
    %c0_183 = arith.constant 0 : index
    %284 = vector.load %arg5[%c4_182, %c0_183] : memref<16x64xf32, #tpu.memory_space<vmem>>, vector<1x64xf32>
    %c0_184 = arith.constant 0 : index
    %c256 = arith.constant 256 : index
    %285 = vector.load %arg4[%c0_184, %c256] : memref<1x1024xf32, #tpu.memory_space<vmem>>, vector<1x64xf32>
    tpu.vector_store %arg4[%c0_184, %c256], %284 {strides = array<i32>} : memref<1x1024xf32, #tpu.memory_space<vmem>>, vector<1x64xf32>,
    %c5_185 = arith.constant 5 : index
    %c0_186 = arith.constant 0 : index
    %286 = vector.load %arg5[%c5_185, %c0_186] : memref<16x64xf32, #tpu.memory_space<vmem>>, vector<1x64xf32>
    %c0_187 = arith.constant 0 : index
    %c320 = arith.constant 320 : index
    %287 = vector.load %arg4[%c0_187, %c320] : memref<1x1024xf32, #tpu.memory_space<vmem>>, vector<1x64xf32>
    tpu.vector_store %arg4[%c0_187, %c320], %286 {strides = array<i32>} : memref<1x1024xf32, #tpu.memory_space<vmem>>, vector<1x64xf32>,
    %c6_188 = arith.constant 6 : index
    %c0_189 = arith.constant 0 : index
    %288 = vector.load %arg5[%c6_188, %c0_189] : memref<16x64xf32, #tpu.memory_space<vmem>>, vector<1x64xf32>
    %c0_190 = arith.constant 0 : index
    %c384 = arith.constant 384 : index
    %289 = vector.load %arg4[%c0_190, %c384] : memref<1x1024xf32, #tpu.memory_space<vmem>>, vector<1x64xf32>
    tpu.vector_store %arg4[%c0_190, %c384], %288 {strides = array<i32>} : memref<1x1024xf32, #tpu.memory_space<vmem>>, vector<1x64xf32>,
    %c7_191 = arith.constant 7 : index
    %c0_192 = arith.constant 0 : index
    %290 = vector.load %arg5[%c7_191, %c0_192] : memref<16x64xf32, #tpu.memory_space<vmem>>, vector<1x64xf32>
    %c0_193 = arith.constant 0 : index
    %c448 = arith.constant 448 : index
    %291 = vector.load %arg4[%c0_193, %c448] : memref<1x1024xf32, #tpu.memory_space<vmem>>, vector<1x64xf32>
    tpu.vector_store %arg4[%c0_193, %c448], %290 {strides = array<i32>} : memref<1x1024xf32, #tpu.memory_space<vmem>>, vector<1x64xf32>,
    %c8_194 = arith.constant 8 : index
    %c0_195 = arith.constant 0 : index
    %292 = vector.load %arg5[%c8_194, %c0_195] : memref<16x64xf32, #tpu.memory_space<vmem>>, vector<1x64xf32>
    %c0_196 = arith.constant 0 : index
    %c512 = arith.constant 512 : index
    %293 = vector.load %arg4[%c0_196, %c512] : memref<1x1024xf32, #tpu.memory_space<vmem>>, vector<1x64xf32>
    tpu.vector_store %arg4[%c0_196, %c512], %292 {strides = array<i32>} : memref<1x1024xf32, #tpu.memory_space<vmem>>, vector<1x64xf32>,
    %c9_197 = arith.constant 9 : index
    %c0_198 = arith.constant 0 : index
    %294 = vector.load %arg5[%c9_197, %c0_198] : memref<16x64xf32, #tpu.memory_space<vmem>>, vector<1x64xf32>
    %c0_199 = arith.constant 0 : index
    %c576 = arith.constant 576 : index
    %295 = vector.load %arg4[%c0_199, %c576] : memref<1x1024xf32, #tpu.memory_space<vmem>>, vector<1x64xf32>
    tpu.vector_store %arg4[%c0_199, %c576], %294 {strides = array<i32>} : memref<1x1024xf32, #tpu.memory_space<vmem>>, vector<1x64xf32>,
    %c10_200 = arith.constant 10 : index
    %c0_201 = arith.constant 0 : index
    %296 = vector.load %arg5[%c10_200, %c0_201] : memref<16x64xf32, #tpu.memory_space<vmem>>, vector<1x64xf32>
    %c0_202 = arith.constant 0 : index
    %c640 = arith.constant 640 : index
    %297 = vector.load %arg4[%c0_202, %c640] : memref<1x1024xf32, #tpu.memory_space<vmem>>, vector<1x64xf32>
    tpu.vector_store %arg4[%c0_202, %c640], %296 {strides = array<i32>} : memref<1x1024xf32, #tpu.memory_space<vmem>>, vector<1x64xf32>,
    %c11_203 = arith.constant 11 : index
    %c0_204 = arith.constant 0 : index
    %298 = vector.load %arg5[%c11_203, %c0_204] : memref<16x64xf32, #tpu.memory_space<vmem>>, vector<1x64xf32>
    %c0_205 = arith.constant 0 : index
    %c704 = arith.constant 704 : index
    %299 = vector.load %arg4[%c0_205, %c704] : memref<1x1024xf32, #tpu.memory_space<vmem>>, vector<1x64xf32>
    tpu.vector_store %arg4[%c0_205, %c704], %298 {strides = array<i32>} : memref<1x1024xf32, #tpu.memory_space<vmem>>, vector<1x64xf32>,
    %c12_206 = arith.constant 12 : index
    %c0_207 = arith.constant 0 : index
    %300 = vector.load %arg5[%c12_206, %c0_207] : memref<16x64xf32, #tpu.memory_space<vmem>>, vector<1x64xf32>
    %c0_208 = arith.constant 0 : index
    %c768 = arith.constant 768 : index
    %301 = vector.load %arg4[%c0_208, %c768] : memref<1x1024xf32, #tpu.memory_space<vmem>>, vector<1x64xf32>
    tpu.vector_store %arg4[%c0_208, %c768], %300 {strides = array<i32>} : memref<1x1024xf32, #tpu.memory_space<vmem>>, vector<1x64xf32>,
    %c13_209 = arith.constant 13 : index
    %c0_210 = arith.constant 0 : index
    %302 = vector.load %arg5[%c13_209, %c0_210] : memref<16x64xf32, #tpu.memory_space<vmem>>, vector<1x64xf32>
    %c0_211 = arith.constant 0 : index
    %c832 = arith.constant 832 : index
    %303 = vector.load %arg4[%c0_211, %c832] : memref<1x1024xf32, #tpu.memory_space<vmem>>, vector<1x64xf32>
    tpu.vector_store %arg4[%c0_211, %c832], %302 {strides = array<i32>} : memref<1x1024xf32, #tpu.memory_space<vmem>>, vector<1x64xf32>,
    %c14_212 = arith.constant 14 : index
    %c0_213 = arith.constant 0 : index
    %304 = vector.load %arg5[%c14_212, %c0_213] : memref<16x64xf32, #tpu.memory_space<vmem>>, vector<1x64xf32>
    %c0_214 = arith.constant 0 : index
    %c896 = arith.constant 896 : index
    %305 = vector.load %arg4[%c0_214, %c896] : memref<1x1024xf32, #tpu.memory_space<vmem>>, vector<1x64xf32>
    tpu.vector_store %arg4[%c0_214, %c896], %304 {strides = array<i32>} : memref<1x1024xf32, #tpu.memory_space<vmem>>, vector<1x64xf32>,
    %c15_215 = arith.constant 15 : index
    %c0_216 = arith.constant 0 : index
    %306 = vector.load %arg5[%c15_215, %c0_216] : memref<16x64xf32, #tpu.memory_space<vmem>>, vector<1x64xf32>
    %c0_217 = arith.constant 0 : index
    %c960 = arith.constant 960 : index
    %307 = vector.load %arg4[%c0_217, %c960] : memref<1x1024xf32, #tpu.memory_space<vmem>>, vector<1x64xf32>
    tpu.vector_store %arg4[%c0_217, %c960], %306 {strides = array<i32>} : memref<1x1024xf32, #tpu.memory_space<vmem>>, vector<1x64xf32>,
    return
  }
  func.func @transform_0(%arg0: i32) -> (i32, i32, i32) {
    %c0_i32 = arith.constant 0 : i32
    %c0_i32_0 = arith.constant 0 : i32
    %c0_i32_1 = arith.constant 0 : i32
    return %arg0, %c0_i32, %c0_i32_0 : i32, i32, i32
  }
  func.func @transform_1(%arg0: i32) -> (i32, i32, i32) {
    %c0_i32 = arith.constant 0 : i32
    %c0_i32_0 = arith.constant 0 : i32
    %c0_i32_1 = arith.constant 0 : i32
    %c0_i32_2 = arith.constant 0 : i32
    return %c0_i32, %c0_i32_0, %c0_i32_1 : i32, i32, i32
  }
  func.func @transform_2(%arg0: i32) -> (i32, i32) {
    %c0_i32 = arith.constant 0 : i32
    %c0_i32_0 = arith.constant 0 : i32
    %c0_i32_1 = arith.constant 0 : i32
    return %c0_i32, %c0_i32_0 : i32, i32
  }
  func.func @transform_3(%arg0: i32) -> (i32, i32) {
    %c0_i32 = arith.constant 0 : i32
    %c0_i32_0 = arith.constant 0 : i32
    return %arg0, %c0_i32 : i32, i32
  }
}

</mosaic_0001>

<llo_original>
// kernel: model_forward.1
$region0: #{model_forward.1}
  #allocation0 [shape = 'u32[]', space=smem, size = 0x4, offset = 0x4, fixed_abs, tag = 'smem constant byte address 0x4 - core index']
  #allocation1 [shape = 'u32[72,128]{1,0:T(1,128)}', space=vmem, size = 0x9000, scoped, tag = 'internal scratch']
  #allocation2 [shape = 'f32[16,64]{1,0:T(8,128)}', space=vmem, size = 0x2000, scoped, tag = 'scratch operand']
  %s0 = inlined_call_operand.vmem [shape: f32[1,8,256], index: 0, kind: input, shape index: {}]
  %s1 = inlined_call_operand.vmem [shape: f32[49,16,8], index: 1, kind: input, shape index: {}]
  %s2 = inlined_call_operand.vmem [shape: f32[16,1], index: 2, kind: input, shape index: {}]
  %s3 = inlined_call_operand.hbm [shape: f32[1,1024], index: 3, kind: output, shape index: {}]
  %s4 = sld [smem:[#allocation0]]
  $region22: #{model_forward.1} parent=0
    _
  %s6 = ssub.s32 1, %s4
  %s7 = scalar_select 0, %s6, %s4
  $region1: #{model_forward.1} parent=0
    #allocation3 [shape = 'u8[4096]{0}', space=vmem, size = 0x1000, scoped, tag = 'output window, operand 0, single buffered']
    #allocation4 [shape = 's32[1]{0}', space=sflag, size = 0x4, scoped, tag = 'scoped memory for model_forward.1']
    %8 = vsyncpa [#allocation4], 0
    // Predicated region
    $region2: #{model_forward.1} parent=1 // pred_check
      _
    $region3: #{model_forward.1} parent=1 // pred_check_branch
      %10 = sbr.rel (0) target = $region5
    $region4: #{model_forward.1} parent=1 // pred_region
      _
    $region5: #{model_forward.1} parent=1 // pred_fallthru
      _
    // Predicated region
    $region6: #{model_forward.1} parent=1 // pred_check
      _
    $region7: #{model_forward.1} parent=1 // pred_check_branch
      %12 = sbr.rel (0) target = $region9
    $region8: #{model_forward.1} parent=1 // pred_region
      _
    $region9: #{model_forward.1} parent=1 // pred_fallthru
      _
    // Predicated region
    $region10: #{model_forward.1} parent=1 // pred_check
      _
    $region11: #{model_forward.1} parent=1 // pred_check_branch
      %14 = sbr.rel (0) target = $region13
    $region12: #{model_forward.1} parent=1 // pred_region
      _
    $region13: #{model_forward.1} parent=1 // pred_fallthru
      _
    %v15 = vld [vmem:[%s0] sm:$0xff]
    %v16 = vld [vmem:[%s0 + $0x8] sm:$0xff]
    %v17 = vld [vmem:[%s1] sm:$0xff]
    %v18 = vld [vmem:[%s1 + $0x8] sm:$0xff]
    %s19 = scalar_lea.vmem %s1, 16
    %v20 = vld [vmem:[%s19] sm:$0xff]
    %v21 = vld [vmem:[%s19 + $0x8] sm:$0xff]
    %24 = vrot.lane.b32.xlu0 %v15, 127
    %v25 = vpop.permute.xlu0 %24
    %26 = vrot.lane.b32.xlu0 %v16, 127
    %v27 = vpop.permute.xlu0 %26
    %vm28 = vcmask 1039360
    %v29 = vsel %vm28, %v25, %v27
    %vm31 = vcmask 64512
    %v33 = vsel %vm31, %v20, 0
    %v36 = vsel %vm31, %v21, 0
    %38 = vmatpush.msra.mxu0 0.0
    %39 = vmatpush.msra.mxu0 0.0
    %40 = vmatpush.msra.mxu0 0.0
    %41 = vmatpush.msra.mxu0 0.0
    %42 = vmatpush.msra.mxu0 0.0
    %43 = vmatpush.msra.mxu0 0.0
    %44 = vmatpush.msra.mxu0 0.0
    %45 = vmatpush.msra.mxu0 0.0
    %46 = vmatpush.msra.mxu0 0.0
    %47 = vmatpush.msra.mxu0 0.0
    %48 = vmatpush.msra.mxu0 0.0
    %49 = vmatpush.msra.mxu0 0.0
    %50 = vmatpush.msra.mxu0 0.0
    %51 = vmatpush.msra.mxu0 0.0
    %52 = vmatpush.msra.mxu0 0.0
    %53 = vmatpush.msra.mxu0 %v29
    %54 = vmatmul.f32.gmra.mxu0 %v33
    %v55 = vpop.f32.mrf.mxu0
    %v56 = vadd.f32 0.0, %v55
    %57 = vmatmul.f32.gmra.mxu0 %v36
    %v58 = vpop.f32.mrf.mxu0
    %v59 = vadd.f32 0.0, %v58
    %60 = vdwg.mxu0
    %v62 = vsel %vm31, %v17, 0
    %v65 = vsel %vm31, %v18, 0
    %67 = vmatpush.msra.mxu0 0.0
    %68 = vmatpush.msra.mxu0 0.0
    %69 = vmatpush.msra.mxu0 0.0
    %70 = vmatpush.msra.mxu0 0.0
    %71 = vmatpush.msra.mxu0 0.0
    %72 = vmatpush.msra.mxu0 0.0
    %73 = vmatpush.msra.mxu0 0.0
    %74 = vmatpush.msra.mxu0 0.0
    %75 = vmatpush.msra.mxu0 0.0
    %76 = vmatpush.msra.mxu0 0.0
    %77 = vmatpush.msra.mxu0 0.0
    %78 = vmatpush.msra.mxu0 0.0
    %79 = vmatpush.msra.mxu0 0.0
    %80 = vmatpush.msra.mxu0 0.0
    %81 = vmatpush.msra.mxu0 0.0
    %82 = vmatpush.msra.mxu0 %v15
    %83 = vmatmul.f32.gmra.mxu0 %v62
    %v84 = vpop.f32.mrf.mxu0
    %v85 = vadd.f32 %v56, %v84
    %86 = vmatmul.f32.gmra.mxu0 %v65
    %v87 = vpop.f32.mrf.mxu0
    %v88 = vadd.f32 %v59, %v87
    %89 = vdwg.mxu0
    %s90 = scalar_lea.vmem %s1, 32
    %v91 = vld [vmem:[%s90] sm:$0xff]
    %v92 = vld [vmem:[%s90 + $0x8] sm:$0xff]
    %93 = vrot.lane.b32.xlu0 %v15, 126
    %v94 = vpop.permute.xlu0 %93
    %95 = vrot.lane.b32.xlu0 %v16, 126
    %v96 = vpop.permute.xlu0 %95
    %vm97 = vcmask 1031168
    %v98 = vsel %vm97, %v94, %v96
    %v101 = vsel %vm31, %v91, 0
    %v104 = vsel %vm31, %v92, 0
    %106 = vmatpush.msra.mxu0 0.0
    %107 = vmatpush.msra.mxu0 0.0
    %108 = vmatpush.msra.mxu0 0.0
    %109 = vmatpush.msra.mxu0 0.0
    %110 = vmatpush.msra.mxu0 0.0
    %111 = vmatpush.msra.mxu0 0.0
    %112 = vmatpush.msra.mxu0 0.0
    %113 = vmatpush.msra.mxu0 0.0
    %114 = vmatpush.msra.mxu0 0.0
    %115 = vmatpush.msra.mxu0 0.0
    %116 = vmatpush.msra.mxu0 0.0
    %117 = vmatpush.msra.mxu0 0.0
    %118 = vmatpush.msra.mxu0 0.0
    %119 = vmatpush.msra.mxu0 0.0
    %120 = vmatpush.msra.mxu0 0.0
    %121 = vmatpush.msra.mxu0 %v98
    %122 = vmatmul.f32.gmra.mxu0 %v101
    %v123 = vpop.f32.mrf.mxu0
    %v124 = vadd.f32 0.0, %v123
    %125 = vmatmul.f32.gmra.mxu0 %v104
    %v126 = vpop.f32.mrf.mxu0
    %v127 = vadd.f32 0.0, %v126
    %128 = vdwg.mxu0
    %v129 = vadd.f32 %v85, %v124
    %v130 = vadd.f32 %v88, %v127
    %s131 = scalar_lea.vmem %s1, 48
    %v132 = vld [vmem:[%s131] sm:$0xff]
    %v133 = vld [vmem:[%s131 + $0x8] sm:$0xff]
    %134 = vrot.lane.b32.xlu0 %v15, 125
    %v135 = vpop.permute.xlu0 %134
    %136 = vrot.lane.b32.xlu0 %v16, 125
    %v137 = vpop.permute.xlu0 %136
    %vm138 = vcmask 1022976
    %v139 = vsel %vm138, %v135, %v137
    %v142 = vsel %vm31, %v132, 0
    %v145 = vsel %vm31, %v133, 0
    %147 = vmatpush.msra.mxu0 0.0
    %148 = vmatpush.msra.mxu0 0.0
    %149 = vmatpush.msra.mxu0 0.0
    %150 = vmatpush.msra.mxu0 0.0
    %151 = vmatpush.msra.mxu0 0.0
    %152 = vmatpush.msra.mxu0 0.0
    %153 = vmatpush.msra.mxu0 0.0
    %154 = vmatpush.msra.mxu0 0.0
    %155 = vmatpush.msra.mxu0 0.0
    %156 = vmatpush.msra.mxu0 0.0
    %157 = vmatpush.msra.mxu0 0.0
    %158 = vmatpush.msra.mxu0 0.0
    %159 = vmatpush.msra.mxu0 0.0
    %160 = vmatpush.msra.mxu0 0.0
    %161 = vmatpush.msra.mxu0 0.0
    %162 = vmatpush.msra.mxu0 %v139
    %163 = vmatmul.f32.gmra.mxu0 %v142
    %v164 = vpop.f32.mrf.mxu0
    %v165 = vadd.f32 0.0, %v164
    %166 = vmatmul.f32.gmra.mxu0 %v145
    %v167 = vpop.f32.mrf.mxu0
    %v168 = vadd.f32 0.0, %v167
    %169 = vdwg.mxu0
    %v170 = vadd.f32 %v129, %v165
    %v171 = vadd.f32 %v130, %v168
    %s172 = scalar_lea.vmem %s1, 64
    %v173 = vld [vmem:[%s172] sm:$0xff]
    %v174 = vld [vmem:[%s172 + $0x8] sm:$0xff]
    %175 = vrot.lane.b32.xlu0 %v15, 124
    %v176 = vpop.permute.xlu0 %175
    %177 = vrot.lane.b32.xlu0 %v16, 124
    %v178 = vpop.permute.xlu0 %177
    %vm179 = vcmask 1014784
    %v180 = vsel %vm179, %v176, %v178
    %v183 = vsel %vm31, %v173, 0
    %v186 = vsel %vm31, %v174, 0
    %188 = vmatpush.msra.mxu0 0.0
    %189 = vmatpush.msra.mxu0 0.0
    %190 = vmatpush.msra.mxu0 0.0
    %191 = vmatpush.msra.mxu0 0.0
    %192 = vmatpush.msra.mxu0 0.0
    %193 = vmatpush.msra.mxu0 0.0
    %194 = vmatpush.msra.mxu0 0.0
    %195 = vmatpush.msra.mxu0 0.0
    %196 = vmatpush.msra.mxu0 0.0
    %197 = vmatpush.msra.mxu0 0.0
    %198 = vmatpush.msra.mxu0 0.0
    %199 = vmatpush.msra.mxu0 0.0
    %200 = vmatpush.msra.mxu0 0.0
    %201 = vmatpush.msra.mxu0 0.0
    %202 = vmatpush.msra.mxu0 0.0
    %203 = vmatpush.msra.mxu0 %v180
    %204 = vmatmul.f32.gmra.mxu0 %v183
    %v205 = vpop.f32.mrf.mxu0
    %v206 = vadd.f32 0.0, %v205
    %207 = vmatmul.f32.gmra.mxu0 %v186
    %v208 = vpop.f32.mrf.mxu0
    %v209 = vadd.f32 0.0, %v208
    %210 = vdwg.mxu0
    %v211 = vadd.f32 %v170, %v206
    %v212 = vadd.f32 %v171, %v209
    %s213 = scalar_lea.vmem %s1, 80
    %v214 = vld [vmem:[%s213] sm:$0xff]
    %v215 = vld [vmem:[%s213 + $0x8] sm:$0xff]
    %216 = vrot.lane.b32.xlu0 %v15, 123
    %v217 = vpop.permute.xlu0 %216
    %218 = vrot.lane.b32.xlu0 %v16, 123
    %v219 = vpop.permute.xlu0 %218
    %vm220 = vcmask 1006592
    %v221 = vsel %vm220, %v217, %v219
    %v224 = vsel %vm31, %v214, 0
    %v227 = vsel %vm31, %v215, 0
    %229 = vmatpush.msra.mxu0 0.0
    %230 = vmatpush.msra.mxu0 0.0
    %231 = vmatpush.msra.mxu0 0.0
    %232 = vmatpush.msra.mxu0 0.0
    %233 = vmatpush.msra.mxu0 0.0
    %234 = vmatpush.msra.mxu0 0.0
    %235 = vmatpush.msra.mxu0 0.0
    %236 = vmatpush.msra.mxu0 0.0
    %237 = vmatpush.msra.mxu0 0.0
    %238 = vmatpush.msra.mxu0 0.0
    %239 = vmatpush.msra.mxu0 0.0
    %240 = vmatpush.msra.mxu0 0.0
    %241 = vmatpush.msra.mxu0 0.0
    %242 = vmatpush.msra.mxu0 0.0
    %243 = vmatpush.msra.mxu0 0.0
    %244 = vmatpush.msra.mxu0 %v221
    %245 = vmatmul.f32.gmra.mxu0 %v224
    %v246 = vpop.f32.mrf.mxu0
    %v247 = vadd.f32 0.0, %v246
    %248 = vmatmul.f32.gmra.mxu0 %v227
    %v249 = vpop.f32.mrf.mxu0
    %v250 = vadd.f32 0.0, %v249
    %251 = vdwg.mxu0
    %v252 = vadd.f32 %v211, %v247
    %v253 = vadd.f32 %v212, %v250
    %s254 = scalar_lea.vmem %s1, 96
    %v255 = vld [vmem:[%s254] sm:$0xff]
    %v256 = vld [vmem:[%s254 + $0x8] sm:$0xff]
    %257 = vrot.lane.b32.xlu0 %v15, 122
    %v258 = vpop.permute.xlu0 %257
    %259 = vrot.lane.b32.xlu0 %v16, 122
    %v260 = vpop.permute.xlu0 %259
    %vm261 = vcmask 998400
    %v262 = vsel %vm261, %v258, %v260
    %v265 = vsel %vm31, %v255, 0
    %v268 = vsel %vm31, %v256, 0
    %270 = vmatpush.msra.mxu0 0.0
    %271 = vmatpush.msra.mxu0 0.0
    %272 = vmatpush.msra.mxu0 0.0
    %273 = vmatpush.msra.mxu0 0.0
    %274 = vmatpush.msra.mxu0 0.0
    %275 = vmatpush.msra.mxu0 0.0
    %276 = vmatpush.msra.mxu0 0.0
    %277 = vmatpush.msra.mxu0 0.0
    %278 = vmatpush.msra.mxu0 0.0
    %279 = vmatpush.msra.mxu0 0.0
    %280 = vmatpush.msra.mxu0 0.0
    %281 = vmatpush.msra.mxu0 0.0
    %282 = vmatpush.msra.mxu0 0.0
    %283 = vmatpush.msra.mxu0 0.0
    %284 = vmatpush.msra.mxu0 0.0
    %285 = vmatpush.msra.mxu0 %v262
    %286 = vmatmul.f32.gmra.mxu0 %v265
    %v287 = vpop.f32.mrf.mxu0
    %v288 = vadd.f32 0.0, %v287
    %289 = vmatmul.f32.gmra.mxu0 %v268
    %v290 = vpop.f32.mrf.mxu0
    %v291 = vadd.f32 0.0, %v290
    %292 = vdwg.mxu0
    %v293 = vadd.f32 %v252, %v288
    %v294 = vadd.f32 %v253, %v291
    %s295 = scalar_lea.vmem %s1, 112
    %v296 = vld [vmem:[%s295] sm:$0xff]
    %v297 = vld [vmem:[%s295 + $0x8] sm:$0xff]
    %298 = vrot.lane.b32.xlu0 %v15, 114
    %v299 = vpop.permute.xlu0 %298
    %300 = vrot.lane.b32.xlu0 %v16, 114
    %v301 = vpop.permute.xlu0 %300
    %vm302 = vcmask 932864
    %v303 = vsel %vm302, %v299, %v301
    %v306 = vsel %vm31, %v296, 0
    %v309 = vsel %vm31, %v297, 0
    %311 = vmatpush.msra.mxu0 0.0
    %312 = vmatpush.msra.mxu0 0.0
    %313 = vmatpush.msra.mxu0 0.0
    %314 = vmatpush.msra.mxu0 0.0
    %315 = vmatpush.msra.mxu0 0.0
    %316 = vmatpush.msra.mxu0 0.0
    %317 = vmatpush.msra.mxu0 0.0
    %318 = vmatpush.msra.mxu0 0.0
    %319 = vmatpush.msra.mxu0 0.0
    %320 = vmatpush.msra.mxu0 0.0
    %321 = vmatpush.msra.mxu0 0.0
    %322 = vmatpush.msra.mxu0 0.0
    %323 = vmatpush.msra.mxu0 0.0
    %324 = vmatpush.msra.mxu0 0.0
    %325 = vmatpush.msra.mxu0 0.0
    %326 = vmatpush.msra.mxu0 %v303
    %327 = vmatmul.f32.gmra.mxu0 %v306
    %v328 = vpop.f32.mrf.mxu0
    %v329 = vadd.f32 0.0, %v328
    %330 = vmatmul.f32.gmra.mxu0 %v309
    %v331 = vpop.f32.mrf.mxu0
    %v332 = vadd.f32 0.0, %v331
    %333 = vdwg.mxu0
    %v334 = vadd.f32 %v293, %v329
    %v335 = vadd.f32 %v294, %v332
    %s336 = scalar_lea.vmem %s1, 128
    %v337 = vld [vmem:[%s336] sm:$0xff]
    %v338 = vld [vmem:[%s336 + $0x8] sm:$0xff]
    %339 = vrot.lane.b32.xlu0 %v15, 113
    %v340 = vpop.permute.xlu0 %339
    %341 = vrot.lane.b32.xlu0 %v16, 113
    %v342 = vpop.permute.xlu0 %341
    %vm343 = vcmask 924672
    %v344 = vsel %vm343, %v340, %v342
    %v347 = vsel %vm31, %v337, 0
    %v350 = vsel %vm31, %v338, 0
    %352 = vmatpush.msra.mxu0 0.0
    %353 = vmatpush.msra.mxu0 0.0
    %354 = vmatpush.msra.mxu0 0.0
    %355 = vmatpush.msra.mxu0 0.0
    %356 = vmatpush.msra.mxu0 0.0
    %357 = vmatpush.msra.mxu0 0.0
    %358 = vmatpush.msra.mxu0 0.0
    %359 = vmatpush.msra.mxu0 0.0
    %360 = vmatpush.msra.mxu0 0.0
    %361 = vmatpush.msra.mxu0 0.0
    %362 = vmatpush.msra.mxu0 0.0
    %363 = vmatpush.msra.mxu0 0.0
    %364 = vmatpush.msra.mxu0 0.0
    %365 = vmatpush.msra.mxu0 0.0
    %366 = vmatpush.msra.mxu0 0.0
    %367 = vmatpush.msra.mxu0 %v344
    %368 = vmatmul.f32.gmra.mxu0 %v347
    %v369 = vpop.f32.mrf.mxu0
    %v370 = vadd.f32 0.0, %v369
    %371 = vmatmul.f32.gmra.mxu0 %v350
    %v372 = vpop.f32.mrf.mxu0
    %v373 = vadd.f32 0.0, %v372
    %374 = vdwg.mxu0
    %v375 = vadd.f32 %v334, %v370
    %v376 = vadd.f32 %v335, %v373
    %s377 = scalar_lea.vmem %s1, 144
    %v378 = vld [vmem:[%s377] sm:$0xff]
    %v379 = vld [vmem:[%s377 + $0x8] sm:$0xff]
    %380 = vrot.lane.b32.xlu0 %v15, 112
    %v381 = vpop.permute.xlu0 %380
    %382 = vrot.lane.b32.xlu0 %v16, 112
    %v383 = vpop.permute.xlu0 %382
    %vm384 = vcmask 916480
    %v385 = vsel %vm384, %v381, %v383
    %v388 = vsel %vm31, %v378, 0
    %v391 = vsel %vm31, %v379, 0
    %393 = vmatpush.msra.mxu0 0.0
    %394 = vmatpush.msra.mxu0 0.0
    %395 = vmatpush.msra.mxu0 0.0
    %396 = vmatpush.msra.mxu0 0.0
    %397 = vmatpush.msra.mxu0 0.0
    %398 = vmatpush.msra.mxu0 0.0
    %399 = vmatpush.msra.mxu0 0.0
    %400 = vmatpush.msra.mxu0 0.0
    %401 = vmatpush.msra.mxu0 0.0
    %402 = vmatpush.msra.mxu0 0.0
    %403 = vmatpush.msra.mxu0 0.0
    %404 = vmatpush.msra.mxu0 0.0
    %405 = vmatpush.msra.mxu0 0.0
    %406 = vmatpush.msra.mxu0 0.0
    %407 = vmatpush.msra.mxu0 0.0
    %408 = vmatpush.msra.mxu0 %v385
    %409 = vmatmul.f32.gmra.mxu0 %v388
    %v410 = vpop.f32.mrf.mxu0
    %v411 = vadd.f32 0.0, %v410
    %412 = vmatmul.f32.gmra.mxu0 %v391
    %v413 = vpop.f32.mrf.mxu0
    %v414 = vadd.f32 0.0, %v413
    %415 = vdwg.mxu0
    %v416 = vadd.f32 %v375, %v411
    %v417 = vadd.f32 %v376, %v414
    %s418 = scalar_lea.vmem %s1, 160
    %v419 = vld [vmem:[%s418] sm:$0xff]
    %v420 = vld [vmem:[%s418 + $0x8] sm:$0xff]
    %421 = vrot.lane.b32.xlu0 %v15, 111
    %v422 = vpop.permute.xlu0 %421
    %423 = vrot.lane.b32.xlu0 %v16, 111
    %v424 = vpop.permute.xlu0 %423
    %vm425 = vcmask 908288
    %v426 = vsel %vm425, %v422, %v424
    %v429 = vsel %vm31, %v419, 0
    %v432 = vsel %vm31, %v420, 0
    %434 = vmatpush.msra.mxu0 0.0
    %435 = vmatpush.msra.mxu0 0.0
    %436 = vmatpush.msra.mxu0 0.0
    %437 = vmatpush.msra.mxu0 0.0
    %438 = vmatpush.msra.mxu0 0.0
    %439 = vmatpush.msra.mxu0 0.0
    %440 = vmatpush.msra.mxu0 0.0
    %441 = vmatpush.msra.mxu0 0.0
    %442 = vmatpush.msra.mxu0 0.0
    %443 = vmatpush.msra.mxu0 0.0
    %444 = vmatpush.msra.mxu0 0.0
    %445 = vmatpush.msra.mxu0 0.0
    %446 = vmatpush.msra.mxu0 0.0
    %447 = vmatpush.msra.mxu0 0.0
    %448 = vmatpush.msra.mxu0 0.0
    %449 = vmatpush.msra.mxu0 %v426
    %450 = vmatmul.f32.gmra.mxu0 %v429
    %v451 = vpop.f32.mrf.mxu0
    %v452 = vadd.f32 0.0, %v451
    %453 = vmatmul.f32.gmra.mxu0 %v432
    %v454 = vpop.f32.mrf.mxu0
    %v455 = vadd.f32 0.0, %v454
    %456 = vdwg.mxu0
    %v457 = vadd.f32 %v416, %v452
    %v458 = vadd.f32 %v417, %v455
    %s459 = scalar_lea.vmem %s1, 176
    %v460 = vld [vmem:[%s459] sm:$0xff]
    %v461 = vld [vmem:[%s459 + $0x8] sm:$0xff]
    %462 = vrot.lane.b32.xlu0 %v15, 110
    %v463 = vpop.permute.xlu0 %462
    %464 = vrot.lane.b32.xlu0 %v16, 110
    %v465 = vpop.permute.xlu0 %464
    %vm466 = vcmask 900096
    %v467 = vsel %vm466, %v463, %v465
    %v470 = vsel %vm31, %v460, 0
    %v473 = vsel %vm31, %v461, 0
    %475 = vmatpush.msra.mxu0 0.0
    %476 = vmatpush.msra.mxu0 0.0
    %477 = vmatpush.msra.mxu0 0.0
    %478 = vmatpush.msra.mxu0 0.0
    %479 = vmatpush.msra.mxu0 0.0
    %480 = vmatpush.msra.mxu0 0.0
    %481 = vmatpush.msra.mxu0 0.0
    %482 = vmatpush.msra.mxu0 0.0
    %483 = vmatpush.msra.mxu0 0.0
    %484 = vmatpush.msra.mxu0 0.0
    %485 = vmatpush.msra.mxu0 0.0
    %486 = vmatpush.msra.mxu0 0.0
    %487 = vmatpush.msra.mxu0 0.0
    %488 = vmatpush.msra.mxu0 0.0
    %489 = vmatpush.msra.mxu0 0.0
    %490 = vmatpush.msra.mxu0 %v467
    %491 = vmatmul.f32.gmra.mxu0 %v470
    %v492 = vpop.f32.mrf.mxu0
    %v493 = vadd.f32 0.0, %v492
    %494 = vmatmul.f32.gmra.mxu0 %v473
    %v495 = vpop.f32.mrf.mxu0
    %v496 = vadd.f32 0.0, %v495
    %497 = vdwg.mxu0
    %v498 = vadd.f32 %v457, %v493
    %v499 = vadd.f32 %v458, %v496
    %s500 = scalar_lea.vmem %s1, 192
    %v501 = vld [vmem:[%s500] sm:$0xff]
    %v502 = vld [vmem:[%s500 + $0x8] sm:$0xff]
    %503 = vrot.lane.b32.xlu0 %v15, 109
    %v504 = vpop.permute.xlu0 %503
    %505 = vrot.lane.b32.xlu0 %v16, 109
    %v506 = vpop.permute.xlu0 %505
    %vm507 = vcmask 891904
    %v508 = vsel %vm507, %v504, %v506
    %v511 = vsel %vm31, %v501, 0
    %v514 = vsel %vm31, %v502, 0
    %516 = vmatpush.msra.mxu0 0.0
    %517 = vmatpush.msra.mxu0 0.0
    %518 = vmatpush.msra.mxu0 0.0
    %519 = vmatpush.msra.mxu0 0.0
    %520 = vmatpush.msra.mxu0 0.0
    %521 = vmatpush.msra.mxu0 0.0
    %522 = vmatpush.msra.mxu0 0.0
    %523 = vmatpush.msra.mxu0 0.0
    %524 = vmatpush.msra.mxu0 0.0
    %525 = vmatpush.msra.mxu0 0.0
    %526 = vmatpush.msra.mxu0 0.0
    %527 = vmatpush.msra.mxu0 0.0
    %528 = vmatpush.msra.mxu0 0.0
    %529 = vmatpush.msra.mxu0 0.0
    %530 = vmatpush.msra.mxu0 0.0
    %531 = vmatpush.msra.mxu0 %v508
    %532 = vmatmul.f32.gmra.mxu0 %v511
    %v533 = vpop.f32.mrf.mxu0
    %v534 = vadd.f32 0.0, %v533
    %535 = vmatmul.f32.gmra.mxu0 %v514
    %v536 = vpop.f32.mrf.mxu0
    %v537 = vadd.f32 0.0, %v536
    %538 = vdwg.mxu0
    %v539 = vadd.f32 %v498, %v534
    %v540 = vadd.f32 %v499, %v537
    %s541 = scalar_lea.vmem %s1, 208
    %v542 = vld [vmem:[%s541] sm:$0xff]
    %v543 = vld [vmem:[%s541 + $0x8] sm:$0xff]
    %544 = vrot.lane.b32.xlu0 %v15, 108
    %v545 = vpop.permute.xlu0 %544
    %546 = vrot.lane.b32.xlu0 %v16, 108
    %v547 = vpop.permute.xlu0 %546
    %vm548 = vcmask 883712
    %v549 = vsel %vm548, %v545, %v547
    %v552 = vsel %vm31, %v542, 0
    %v555 = vsel %vm31, %v543, 0
    %557 = vmatpush.msra.mxu0 0.0
    %558 = vmatpush.msra.mxu0 0.0
    %559 = vmatpush.msra.mxu0 0.0
    %560 = vmatpush.msra.mxu0 0.0
    %561 = vmatpush.msra.mxu0 0.0
    %562 = vmatpush.msra.mxu0 0.0
    %563 = vmatpush.msra.mxu0 0.0
    %564 = vmatpush.msra.mxu0 0.0
    %565 = vmatpush.msra.mxu0 0.0
    %566 = vmatpush.msra.mxu0 0.0
    %567 = vmatpush.msra.mxu0 0.0
    %568 = vmatpush.msra.mxu0 0.0
    %569 = vmatpush.msra.mxu0 0.0
    %570 = vmatpush.msra.mxu0 0.0
    %571 = vmatpush.msra.mxu0 0.0
    %572 = vmatpush.msra.mxu0 %v549
    %573 = vmatmul.f32.gmra.mxu0 %v552
    %v574 = vpop.f32.mrf.mxu0
    %v575 = vadd.f32 0.0, %v574
    %576 = vmatmul.f32.gmra.mxu0 %v555
    %v577 = vpop.f32.mrf.mxu0
    %v578 = vadd.f32 0.0, %v577
    %579 = vdwg.mxu0
    %v580 = vadd.f32 %v539, %v575
    %v581 = vadd.f32 %v540, %v578
    %s582 = scalar_lea.vmem %s1, 224
    %v583 = vld [vmem:[%s582] sm:$0xff]
    %v584 = vld [vmem:[%s582 + $0x8] sm:$0xff]
    %585 = vrot.lane.b32.xlu0 %v15, 100
    %v586 = vpop.permute.xlu0 %585
    %587 = vrot.lane.b32.xlu0 %v16, 100
    %v588 = vpop.permute.xlu0 %587
    %vm589 = vcmask 818176
    %v590 = vsel %vm589, %v586, %v588
    %v593 = vsel %vm31, %v583, 0
    %v596 = vsel %vm31, %v584, 0
    %598 = vmatpush.msra.mxu0 0.0
    %599 = vmatpush.msra.mxu0 0.0
    %600 = vmatpush.msra.mxu0 0.0
    %601 = vmatpush.msra.mxu0 0.0
    %602 = vmatpush.msra.mxu0 0.0
    %603 = vmatpush.msra.mxu0 0.0
    %604 = vmatpush.msra.mxu0 0.0
    %605 = vmatpush.msra.mxu0 0.0
    %606 = vmatpush.msra.mxu0 0.0
    %607 = vmatpush.msra.mxu0 0.0
    %608 = vmatpush.msra.mxu0 0.0
    %609 = vmatpush.msra.mxu0 0.0
    %610 = vmatpush.msra.mxu0 0.0
    %611 = vmatpush.msra.mxu0 0.0
    %612 = vmatpush.msra.mxu0 0.0
    %613 = vmatpush.msra.mxu0 %v590
    %614 = vmatmul.f32.gmra.mxu0 %v593
    %v615 = vpop.f32.mrf.mxu0
    %v616 = vadd.f32 0.0, %v615
    %617 = vmatmul.f32.gmra.mxu0 %v596
    %v618 = vpop.f32.mrf.mxu0
    %v619 = vadd.f32 0.0, %v618
    %620 = vdwg.mxu0
    %v621 = vadd.f32 %v580, %v616
    %v622 = vadd.f32 %v581, %v619
    %s623 = scalar_lea.vmem %s1, 240
    %v624 = vld [vmem:[%s623] sm:$0xff]
    %v625 = vld [vmem:[%s623 + $0x8] sm:$0xff]
    %626 = vrot.lane.b32.xlu0 %v15, 99
    %v627 = vpop.permute.xlu0 %626
    %628 = vrot.lane.b32.xlu0 %v16, 99
    %v629 = vpop.permute.xlu0 %628
    %vm630 = vcmask 809984
    %v631 = vsel %vm630, %v627, %v629
    %v634 = vsel %vm31, %v624, 0
    %v637 = vsel %vm31, %v625, 0
    %639 = vmatpush.msra.mxu0 0.0
    %640 = vmatpush.msra.mxu0 0.0
    %641 = vmatpush.msra.mxu0 0.0
    %642 = vmatpush.msra.mxu0 0.0
    %643 = vmatpush.msra.mxu0 0.0
    %644 = vmatpush.msra.mxu0 0.0
    %645 = vmatpush.msra.mxu0 0.0
    %646 = vmatpush.msra.mxu0 0.0
    %647 = vmatpush.msra.mxu0 0.0
    %648 = vmatpush.msra.mxu0 0.0
    %649 = vmatpush.msra.mxu0 0.0
    %650 = vmatpush.msra.mxu0 0.0
    %651 = vmatpush.msra.mxu0 0.0
    %652 = vmatpush.msra.mxu0 0.0
    %653 = vmatpush.msra.mxu0 0.0
    %654 = vmatpush.msra.mxu0 %v631
    %655 = vmatmul.f32.gmra.mxu0 %v634
    %v656 = vpop.f32.mrf.mxu0
    %v657 = vadd.f32 0.0, %v656
    %658 = vmatmul.f32.gmra.mxu0 %v637
    %v659 = vpop.f32.mrf.mxu0
    %v660 = vadd.f32 0.0, %v659
    %661 = vdwg.mxu0
    %v662 = vadd.f32 %v621, %v657
    %v663 = vadd.f32 %v622, %v660
    %s664 = scalar_lea.vmem %s1, 256
    %v665 = vld [vmem:[%s664] sm:$0xff]
    %v666 = vld [vmem:[%s664 + $0x8] sm:$0xff]
    %667 = vrot.lane.b32.xlu0 %v15, 98
    %v668 = vpop.permute.xlu0 %667
    %669 = vrot.lane.b32.xlu0 %v16, 98
    %v670 = vpop.permute.xlu0 %669
    %vm671 = vcmask 801792
    %v672 = vsel %vm671, %v668, %v670
    %v675 = vsel %vm31, %v665, 0
    %v678 = vsel %vm31, %v666, 0
    %680 = vmatpush.msra.mxu0 0.0
    %681 = vmatpush.msra.mxu0 0.0
    %682 = vmatpush.msra.mxu0 0.0
    %683 = vmatpush.msra.mxu0 0.0
    %684 = vmatpush.msra.mxu0 0.0
    %685 = vmatpush.msra.mxu0 0.0
    %686 = vmatpush.msra.mxu0 0.0
    %687 = vmatpush.msra.mxu0 0.0
    %688 = vmatpush.msra.mxu0 0.0
    %689 = vmatpush.msra.mxu0 0.0
    %690 = vmatpush.msra.mxu0 0.0
    %691 = vmatpush.msra.mxu0 0.0
    %692 = vmatpush.msra.mxu0 0.0
    %693 = vmatpush.msra.mxu0 0.0
    %694 = vmatpush.msra.mxu0 0.0
    %695 = vmatpush.msra.mxu0 %v672
    %696 = vmatmul.f32.gmra.mxu0 %v675
    %v697 = vpop.f32.mrf.mxu0
    %v698 = vadd.f32 0.0, %v697
    %699 = vmatmul.f32.gmra.mxu0 %v678
    %v700 = vpop.f32.mrf.mxu0
    %v701 = vadd.f32 0.0, %v700
    %702 = vdwg.mxu0
    %v703 = vadd.f32 %v662, %v698
    %v704 = vadd.f32 %v663, %v701
    %s705 = scalar_lea.vmem %s1, 272
    %v706 = vld [vmem:[%s705] sm:$0xff]
    %v707 = vld [vmem:[%s705 + $0x8] sm:$0xff]
    %708 = vrot.lane.b32.xlu0 %v15, 97
    %v709 = vpop.permute.xlu0 %708
    %710 = vrot.lane.b32.xlu0 %v16, 97
    %v711 = vpop.permute.xlu0 %710
    %vm712 = vcmask 793600
    %v713 = vsel %vm712, %v709, %v711
    %v716 = vsel %vm31, %v706, 0
    %v719 = vsel %vm31, %v707, 0
    %721 = vmatpush.msra.mxu0 0.0
    %722 = vmatpush.msra.mxu0 0.0
    %723 = vmatpush.msra.mxu0 0.0
    %724 = vmatpush.msra.mxu0 0.0
    %725 = vmatpush.msra.mxu0 0.0
    %726 = vmatpush.msra.mxu0 0.0
    %727 = vmatpush.msra.mxu0 0.0
    %728 = vmatpush.msra.mxu0 0.0
    %729 = vmatpush.msra.mxu0 0.0
    %730 = vmatpush.msra.mxu0 0.0
    %731 = vmatpush.msra.mxu0 0.0
    %732 = vmatpush.msra.mxu0 0.0
    %733 = vmatpush.msra.mxu0 0.0
    %734 = vmatpush.msra.mxu0 0.0
    %735 = vmatpush.msra.mxu0 0.0
    %736 = vmatpush.msra.mxu0 %v713
    %737 = vmatmul.f32.gmra.mxu0 %v716
    %v738 = vpop.f32.mrf.mxu0
    %v739 = vadd.f32 0.0, %v738
    %740 = vmatmul.f32.gmra.mxu0 %v719
    %v741 = vpop.f32.mrf.mxu0
    %v742 = vadd.f32 0.0, %v741
    %743 = vdwg.mxu0
    %v744 = vadd.f32 %v703, %v739
    %v745 = vadd.f32 %v704, %v742
    %s746 = scalar_lea.vmem %s1, 288
    %v747 = vld [vmem:[%s746] sm:$0xff]
    %v748 = vld [vmem:[%s746 + $0x8] sm:$0xff]
    %749 = vrot.lane.b32.xlu0 %v15, 96
    %v750 = vpop.permute.xlu0 %749
    %751 = vrot.lane.b32.xlu0 %v16, 96
    %v752 = vpop.permute.xlu0 %751
    %vm753 = vcmask 785408
    %v754 = vsel %vm753, %v750, %v752
    %v757 = vsel %vm31, %v747, 0
    %v760 = vsel %vm31, %v748, 0
    %762 = vmatpush.msra.mxu0 0.0
    %763 = vmatpush.msra.mxu0 0.0
    %764 = vmatpush.msra.mxu0 0.0
    %765 = vmatpush.msra.mxu0 0.0
    %766 = vmatpush.msra.mxu0 0.0
    %767 = vmatpush.msra.mxu0 0.0
    %768 = vmatpush.msra.mxu0 0.0
    %769 = vmatpush.msra.mxu0 0.0
    %770 = vmatpush.msra.mxu0 0.0
    %771 = vmatpush.msra.mxu0 0.0
    %772 = vmatpush.msra.mxu0 0.0
    %773 = vmatpush.msra.mxu0 0.0
    %774 = vmatpush.msra.mxu0 0.0
    %775 = vmatpush.msra.mxu0 0.0
    %776 = vmatpush.msra.mxu0 0.0
    %777 = vmatpush.msra.mxu0 %v754
    %778 = vmatmul.f32.gmra.mxu0 %v757
    %v779 = vpop.f32.mrf.mxu0
    %v780 = vadd.f32 0.0, %v779
    %781 = vmatmul.f32.gmra.mxu0 %v760
    %v782 = vpop.f32.mrf.mxu0
    %v783 = vadd.f32 0.0, %v782
    %784 = vdwg.mxu0
    %v785 = vadd.f32 %v744, %v780
    %v786 = vadd.f32 %v745, %v783
    %s787 = scalar_lea.vmem %s1, 304
    %v788 = vld [vmem:[%s787] sm:$0xff]
    %v789 = vld [vmem:[%s787 + $0x8] sm:$0xff]
    %790 = vrot.lane.b32.xlu0 %v15, 95
    %v791 = vpop.permute.xlu0 %790
    %792 = vrot.lane.b32.xlu0 %v16, 95
    %v793 = vpop.permute.xlu0 %792
    %vm794 = vcmask 777216
    %v795 = vsel %vm794, %v791, %v793
    %v798 = vsel %vm31, %v788, 0
    %v801 = vsel %vm31, %v789, 0
    %803 = vmatpush.msra.mxu0 0.0
    %804 = vmatpush.msra.mxu0 0.0
    %805 = vmatpush.msra.mxu0 0.0
    %806 = vmatpush.msra.mxu0 0.0
    %807 = vmatpush.msra.mxu0 0.0
    %808 = vmatpush.msra.mxu0 0.0
    %809 = vmatpush.msra.mxu0 0.0
    %810 = vmatpush.msra.mxu0 0.0
    %811 = vmatpush.msra.mxu0 0.0
    %812 = vmatpush.msra.mxu0 0.0
    %813 = vmatpush.msra.mxu0 0.0
    %814 = vmatpush.msra.mxu0 0.0
    %815 = vmatpush.msra.mxu0 0.0
    %816 = vmatpush.msra.mxu0 0.0
    %817 = vmatpush.msra.mxu0 0.0
    %818 = vmatpush.msra.mxu0 %v795
    %819 = vmatmul.f32.gmra.mxu0 %v798
    %v820 = vpop.f32.mrf.mxu0
    %v821 = vadd.f32 0.0, %v820
    %822 = vmatmul.f32.gmra.mxu0 %v801
    %v823 = vpop.f32.mrf.mxu0
    %v824 = vadd.f32 0.0, %v823
    %825 = vdwg.mxu0
    %v826 = vadd.f32 %v785, %v821
    %v827 = vadd.f32 %v786, %v824
    %s828 = scalar_lea.vmem %s1, 320
    %v829 = vld [vmem:[%s828] sm:$0xff]
    %v830 = vld [vmem:[%s828 + $0x8] sm:$0xff]
    %831 = vrot.lane.b32.xlu0 %v15, 94
    %v832 = vpop.permute.xlu0 %831
    %833 = vrot.lane.b32.xlu0 %v16, 94
    %v834 = vpop.permute.xlu0 %833
    %vm835 = vcmask 769024
    %v836 = vsel %vm835, %v832, %v834
    %v839 = vsel %vm31, %v829, 0
    %v842 = vsel %vm31, %v830, 0
    %844 = vmatpush.msra.mxu0 0.0
    %845 = vmatpush.msra.mxu0 0.0
    %846 = vmatpush.msra.mxu0 0.0
    %847 = vmatpush.msra.mxu0 0.0
    %848 = vmatpush.msra.mxu0 0.0
    %849 = vmatpush.msra.mxu0 0.0
    %850 = vmatpush.msra.mxu0 0.0
    %851 = vmatpush.msra.mxu0 0.0
    %852 = vmatpush.msra.mxu0 0.0
    %853 = vmatpush.msra.mxu0 0.0
    %854 = vmatpush.msra.mxu0 0.0
    %855 = vmatpush.msra.mxu0 0.0
    %856 = vmatpush.msra.mxu0 0.0
    %857 = vmatpush.msra.mxu0 0.0
    %858 = vmatpush.msra.mxu0 0.0
    %859 = vmatpush.msra.mxu0 %v836
    %860 = vmatmul.f32.gmra.mxu0 %v839
    %v861 = vpop.f32.mrf.mxu0
    %v862 = vadd.f32 0.0, %v861
    %863 = vmatmul.f32.gmra.mxu0 %v842
    %v864 = vpop.f32.mrf.mxu0
    %v865 = vadd.f32 0.0, %v864
    %866 = vdwg.mxu0
    %v867 = vadd.f32 %v826, %v862
    %v868 = vadd.f32 %v827, %v865
    %s869 = scalar_lea.vmem %s1, 336
    %v870 = vld [vmem:[%s869] sm:$0xff]
    %v871 = vld [vmem:[%s869 + $0x8] sm:$0xff]
    %872 = vrot.lane.b32.xlu0 %v15, 86
    %v873 = vpop.permute.xlu0 %872
    %874 = vrot.lane.b32.xlu0 %v16, 86
    %v875 = vpop.permute.xlu0 %874
    %vm876 = vcmask 703488
    %v877 = vsel %vm876, %v873, %v875
    %v880 = vsel %vm31, %v870, 0
    %v883 = vsel %vm31, %v871, 0
    %885 = vmatpush.msra.mxu0 0.0
    %886 = vmatpush.msra.mxu0 0.0
    %887 = vmatpush.msra.mxu0 0.0
    %888 = vmatpush.msra.mxu0 0.0
    %889 = vmatpush.msra.mxu0 0.0
    %890 = vmatpush.msra.mxu0 0.0
    %891 = vmatpush.msra.mxu0 0.0
    %892 = vmatpush.msra.mxu0 0.0
    %893 = vmatpush.msra.mxu0 0.0
    %894 = vmatpush.msra.mxu0 0.0
    %895 = vmatpush.msra.mxu0 0.0
    %896 = vmatpush.msra.mxu0 0.0
    %897 = vmatpush.msra.mxu0 0.0
    %898 = vmatpush.msra.mxu0 0.0
    %899 = vmatpush.msra.mxu0 0.0
    %900 = vmatpush.msra.mxu0 %v877
    %901 = vmatmul.f32.gmra.mxu0 %v880
    %v902 = vpop.f32.mrf.mxu0
    %v903 = vadd.f32 0.0, %v902
    %904 = vmatmul.f32.gmra.mxu0 %v883
    %v905 = vpop.f32.mrf.mxu0
    %v906 = vadd.f32 0.0, %v905
    %907 = vdwg.mxu0
    %v908 = vadd.f32 %v867, %v903
    %v909 = vadd.f32 %v868, %v906
    %s910 = scalar_lea.vmem %s1, 352
    %v911 = vld [vmem:[%s910] sm:$0xff]
    %v912 = vld [vmem:[%s910 + $0x8] sm:$0xff]
    %913 = vrot.lane.b32.xlu0 %v15, 85
    %v914 = vpop.permute.xlu0 %913
    %915 = vrot.lane.b32.xlu0 %v16, 85
    %v916 = vpop.permute.xlu0 %915
    %vm917 = vcmask 695296
    %v918 = vsel %vm917, %v914, %v916
    %v921 = vsel %vm31, %v911, 0
    %v924 = vsel %vm31, %v912, 0
    %926 = vmatpush.msra.mxu0 0.0
    %927 = vmatpush.msra.mxu0 0.0
    %928 = vmatpush.msra.mxu0 0.0
    %929 = vmatpush.msra.mxu0 0.0
    %930 = vmatpush.msra.mxu0 0.0
    %931 = vmatpush.msra.mxu0 0.0
    %932 = vmatpush.msra.mxu0 0.0
    %933 = vmatpush.msra.mxu0 0.0
    %934 = vmatpush.msra.mxu0 0.0
    %935 = vmatpush.msra.mxu0 0.0
    %936 = vmatpush.msra.mxu0 0.0
    %937 = vmatpush.msra.mxu0 0.0
    %938 = vmatpush.msra.mxu0 0.0
    %939 = vmatpush.msra.mxu0 0.0
    %940 = vmatpush.msra.mxu0 0.0
    %941 = vmatpush.msra.mxu0 %v918
    %942 = vmatmul.f32.gmra.mxu0 %v921
    %v943 = vpop.f32.mrf.mxu0
    %v944 = vadd.f32 0.0, %v943
    %945 = vmatmul.f32.gmra.mxu0 %v924
    %v946 = vpop.f32.mrf.mxu0
    %v947 = vadd.f32 0.0, %v946
    %948 = vdwg.mxu0
    %v949 = vadd.f32 %v908, %v944
    %v950 = vadd.f32 %v909, %v947
    %s951 = scalar_lea.vmem %s1, 368
    %v952 = vld [vmem:[%s951] sm:$0xff]
    %v953 = vld [vmem:[%s951 + $0x8] sm:$0xff]
    %954 = vrot.lane.b32.xlu0 %v15, 84
    %v955 = vpop.permute.xlu0 %954
    %956 = vrot.lane.b32.xlu0 %v16, 84
    %v957 = vpop.permute.xlu0 %956
    %vm958 = vcmask 687104
    %v959 = vsel %vm958, %v955, %v957
    %v962 = vsel %vm31, %v952, 0
    %v965 = vsel %vm31, %v953, 0
    %967 = vmatpush.msra.mxu0 0.0
    %968 = vmatpush.msra.mxu0 0.0
    %969 = vmatpush.msra.mxu0 0.0
    %970 = vmatpush.msra.mxu0 0.0
    %971 = vmatpush.msra.mxu0 0.0
    %972 = vmatpush.msra.mxu0 0.0
    %973 = vmatpush.msra.mxu0 0.0
    %974 = vmatpush.msra.mxu0 0.0
    %975 = vmatpush.msra.mxu0 0.0
    %976 = vmatpush.msra.mxu0 0.0
    %977 = vmatpush.msra.mxu0 0.0
    %978 = vmatpush.msra.mxu0 0.0
    %979 = vmatpush.msra.mxu0 0.0
    %980 = vmatpush.msra.mxu0 0.0
    %981 = vmatpush.msra.mxu0 0.0
    %982 = vmatpush.msra.mxu0 %v959
    %983 = vmatmul.f32.gmra.mxu0 %v962
    %v984 = vpop.f32.mrf.mxu0
    %v985 = vadd.f32 0.0, %v984
    %986 = vmatmul.f32.gmra.mxu0 %v965
    %v987 = vpop.f32.mrf.mxu0
    %v988 = vadd.f32 0.0, %v987
    %989 = vdwg.mxu0
    %v990 = vadd.f32 %v949, %v985
    %v991 = vadd.f32 %v950, %v988
    %s992 = scalar_lea.vmem %s1, 384
    %v993 = vld [vmem:[%s992] sm:$0xff]
    %v994 = vld [vmem:[%s992 + $0x8] sm:$0xff]
    %995 = vrot.lane.b32.xlu0 %v15, 83
    %v996 = vpop.permute.xlu0 %995
    %997 = vrot.lane.b32.xlu0 %v16, 83
    %v998 = vpop.permute.xlu0 %997
    %vm999 = vcmask 678912
    %v1000 = vsel %vm999, %v996, %v998
    %v1003 = vsel %vm31, %v993, 0
    %v1006 = vsel %vm31, %v994, 0
    %1008 = vmatpush.msra.mxu0 0.0
    %1009 = vmatpush.msra.mxu0 0.0
    %1010 = vmatpush.msra.mxu0 0.0
    %1011 = vmatpush.msra.mxu0 0.0
    %1012 = vmatpush.msra.mxu0 0.0
    %1013 = vmatpush.msra.mxu0 0.0
    %1014 = vmatpush.msra.mxu0 0.0
    %1015 = vmatpush.msra.mxu0 0.0
    %1016 = vmatpush.msra.mxu0 0.0
    %1017 = vmatpush.msra.mxu0 0.0
    %1018 = vmatpush.msra.mxu0 0.0
    %1019 = vmatpush.msra.mxu0 0.0
    %1020 = vmatpush.msra.mxu0 0.0
    %1021 = vmatpush.msra.mxu0 0.0
    %1022 = vmatpush.msra.mxu0 0.0
    %1023 = vmatpush.msra.mxu0 %v1000
    %1024 = vmatmul.f32.gmra.mxu0 %v1003
    %v1025 = vpop.f32.mrf.mxu0
    %v1026 = vadd.f32 0.0, %v1025
    %1027 = vmatmul.f32.gmra.mxu0 %v1006
    %v1028 = vpop.f32.mrf.mxu0
    %v1029 = vadd.f32 0.0, %v1028
    %1030 = vdwg.mxu0
    %v1031 = vadd.f32 %v990, %v1026
    %v1032 = vadd.f32 %v991, %v1029
    %s1033 = scalar_lea.vmem %s1, 400
    %v1034 = vld [vmem:[%s1033] sm:$0xff]
    %v1035 = vld [vmem:[%s1033 + $0x8] sm:$0xff]
    %1036 = vrot.lane.b32.xlu0 %v15, 82
    %v1037 = vpop.permute.xlu0 %1036
    %1038 = vrot.lane.b32.xlu0 %v16, 82
    %v1039 = vpop.permute.xlu0 %1038
    %vm1040 = vcmask 670720
    %v1041 = vsel %vm1040, %v1037, %v1039
    %v1044 = vsel %vm31, %v1034, 0
    %v1047 = vsel %vm31, %v1035, 0
    %1049 = vmatpush.msra.mxu0 0.0
    %1050 = vmatpush.msra.mxu0 0.0
    %1051 = vmatpush.msra.mxu0 0.0
    %1052 = vmatpush.msra.mxu0 0.0
    %1053 = vmatpush.msra.mxu0 0.0
    %1054 = vmatpush.msra.mxu0 0.0
    %1055 = vmatpush.msra.mxu0 0.0
    %1056 = vmatpush.msra.mxu0 0.0
    %1057 = vmatpush.msra.mxu0 0.0
    %1058 = vmatpush.msra.mxu0 0.0
    %1059 = vmatpush.msra.mxu0 0.0
    %1060 = vmatpush.msra.mxu0 0.0
    %1061 = vmatpush.msra.mxu0 0.0
    %1062 = vmatpush.msra.mxu0 0.0
    %1063 = vmatpush.msra.mxu0 0.0
    %1064 = vmatpush.msra.mxu0 %v1041
    %1065 = vmatmul.f32.gmra.mxu0 %v1044
    %v1066 = vpop.f32.mrf.mxu0
    %v1067 = vadd.f32 0.0, %v1066
    %1068 = vmatmul.f32.gmra.mxu0 %v1047
    %v1069 = vpop.f32.mrf.mxu0
    %v1070 = vadd.f32 0.0, %v1069
    %1071 = vdwg.mxu0
    %v1072 = vadd.f32 %v1031, %v1067
    %v1073 = vadd.f32 %v1032, %v1070
    %s1074 = scalar_lea.vmem %s1, 416
    %v1075 = vld [vmem:[%s1074] sm:$0xff]
    %v1076 = vld [vmem:[%s1074 + $0x8] sm:$0xff]
    %1077 = vrot.lane.b32.xlu0 %v15, 81
    %v1078 = vpop.permute.xlu0 %1077
    %1079 = vrot.lane.b32.xlu0 %v16, 81
    %v1080 = vpop.permute.xlu0 %1079
    %vm1081 = vcmask 662528
    %v1082 = vsel %vm1081, %v1078, %v1080
    %v1085 = vsel %vm31, %v1075, 0
    %v1088 = vsel %vm31, %v1076, 0
    %1090 = vmatpush.msra.mxu0 0.0
    %1091 = vmatpush.msra.mxu0 0.0
    %1092 = vmatpush.msra.mxu0 0.0
    %1093 = vmatpush.msra.mxu0 0.0
    %1094 = vmatpush.msra.mxu0 0.0
    %1095 = vmatpush.msra.mxu0 0.0
    %1096 = vmatpush.msra.mxu0 0.0
    %1097 = vmatpush.msra.mxu0 0.0
    %1098 = vmatpush.msra.mxu0 0.0
    %1099 = vmatpush.msra.mxu0 0.0
    %1100 = vmatpush.msra.mxu0 0.0
    %1101 = vmatpush.msra.mxu0 0.0
    %1102 = vmatpush.msra.mxu0 0.0
    %1103 = vmatpush.msra.mxu0 0.0
    %1104 = vmatpush.msra.mxu0 0.0
    %1105 = vmatpush.msra.mxu0 %v1082
    %1106 = vmatmul.f32.gmra.mxu0 %v1085
    %v1107 = vpop.f32.mrf.mxu0
    %v1108 = vadd.f32 0.0, %v1107
    %1109 = vmatmul.f32.gmra.mxu0 %v1088
    %v1110 = vpop.f32.mrf.mxu0
    %v1111 = vadd.f32 0.0, %v1110
    %1112 = vdwg.mxu0
    %v1113 = vadd.f32 %v1072, %v1108
    %v1114 = vadd.f32 %v1073, %v1111
    %s1115 = scalar_lea.vmem %s1, 432
    %v1116 = vld [vmem:[%s1115] sm:$0xff]
    %v1117 = vld [vmem:[%s1115 + $0x8] sm:$0xff]
    %1118 = vrot.lane.b32.xlu0 %v15, 80
    %v1119 = vpop.permute.xlu0 %1118
    %1120 = vrot.lane.b32.xlu0 %v16, 80
    %v1121 = vpop.permute.xlu0 %1120
    %vm1122 = vcmask 654336
    %v1123 = vsel %vm1122, %v1119, %v1121
    %v1126 = vsel %vm31, %v1116, 0
    %v1129 = vsel %vm31, %v1117, 0
    %1131 = vmatpush.msra.mxu0 0.0
    %1132 = vmatpush.msra.mxu0 0.0
    %1133 = vmatpush.msra.mxu0 0.0
    %1134 = vmatpush.msra.mxu0 0.0
    %1135 = vmatpush.msra.mxu0 0.0
    %1136 = vmatpush.msra.mxu0 0.0
    %1137 = vmatpush.msra.mxu0 0.0
    %1138 = vmatpush.msra.mxu0 0.0
    %1139 = vmatpush.msra.mxu0 0.0
    %1140 = vmatpush.msra.mxu0 0.0
    %1141 = vmatpush.msra.mxu0 0.0
    %1142 = vmatpush.msra.mxu0 0.0
    %1143 = vmatpush.msra.mxu0 0.0
    %1144 = vmatpush.msra.mxu0 0.0
    %1145 = vmatpush.msra.mxu0 0.0
    %1146 = vmatpush.msra.mxu0 %v1123
    %1147 = vmatmul.f32.gmra.mxu0 %v1126
    %v1148 = vpop.f32.mrf.mxu0
    %v1149 = vadd.f32 0.0, %v1148
    %1150 = vmatmul.f32.gmra.mxu0 %v1129
    %v1151 = vpop.f32.mrf.mxu0
    %v1152 = vadd.f32 0.0, %v1151
    %1153 = vdwg.mxu0
    %v1154 = vadd.f32 %v1113, %v1149
    %v1155 = vadd.f32 %v1114, %v1152
    %s1156 = scalar_lea.vmem %s1, 448
    %v1157 = vld [vmem:[%s1156] sm:$0xff]
    %v1158 = vld [vmem:[%s1156 + $0x8] sm:$0xff]
    %1159 = vrot.lane.b32.xlu0 %v15, 72
    %v1160 = vpop.permute.xlu0 %1159
    %1161 = vrot.lane.b32.xlu0 %v16, 72
    %v1162 = vpop.permute.xlu0 %1161
    %vm1163 = vcmask 588800
    %v1164 = vsel %vm1163, %v1160, %v1162
    %v1167 = vsel %vm31, %v1157, 0
    %v1170 = vsel %vm31, %v1158, 0
    %1172 = vmatpush.msra.mxu0 0.0
    %1173 = vmatpush.msra.mxu0 0.0
    %1174 = vmatpush.msra.mxu0 0.0
    %1175 = vmatpush.msra.mxu0 0.0
    %1176 = vmatpush.msra.mxu0 0.0
    %1177 = vmatpush.msra.mxu0 0.0
    %1178 = vmatpush.msra.mxu0 0.0
    %1179 = vmatpush.msra.mxu0 0.0
    %1180 = vmatpush.msra.mxu0 0.0
    %1181 = vmatpush.msra.mxu0 0.0
    %1182 = vmatpush.msra.mxu0 0.0
    %1183 = vmatpush.msra.mxu0 0.0
    %1184 = vmatpush.msra.mxu0 0.0
    %1185 = vmatpush.msra.mxu0 0.0
    %1186 = vmatpush.msra.mxu0 0.0
    %1187 = vmatpush.msra.mxu0 %v1164
    %1188 = vmatmul.f32.gmra.mxu0 %v1167
    %v1189 = vpop.f32.mrf.mxu0
    %v1190 = vadd.f32 0.0, %v1189
    %1191 = vmatmul.f32.gmra.mxu0 %v1170
    %v1192 = vpop.f32.mrf.mxu0
    %v1193 = vadd.f32 0.0, %v1192
    %1194 = vdwg.mxu0
    %v1195 = vadd.f32 %v1154, %v1190
    %v1196 = vadd.f32 %v1155, %v1193
    %s1197 = scalar_lea.vmem %s1, 464
    %v1198 = vld [vmem:[%s1197] sm:$0xff]
    %v1199 = vld [vmem:[%s1197 + $0x8] sm:$0xff]
    %1200 = vrot.lane.b32.xlu0 %v15, 71
    %v1201 = vpop.permute.xlu0 %1200
    %1202 = vrot.lane.b32.xlu0 %v16, 71
    %v1203 = vpop.permute.xlu0 %1202
    %vm1204 = vcmask 580608
    %v1205 = vsel %vm1204, %v1201, %v1203
    %v1208 = vsel %vm31, %v1198, 0
    %v1211 = vsel %vm31, %v1199, 0
    %1213 = vmatpush.msra.mxu0 0.0
    %1214 = vmatpush.msra.mxu0 0.0
    %1215 = vmatpush.msra.mxu0 0.0
    %1216 = vmatpush.msra.mxu0 0.0
    %1217 = vmatpush.msra.mxu0 0.0
    %1218 = vmatpush.msra.mxu0 0.0
    %1219 = vmatpush.msra.mxu0 0.0
    %1220 = vmatpush.msra.mxu0 0.0
    %1221 = vmatpush.msra.mxu0 0.0
    %1222 = vmatpush.msra.mxu0 0.0
    %1223 = vmatpush.msra.mxu0 0.0
    %1224 = vmatpush.msra.mxu0 0.0
    %1225 = vmatpush.msra.mxu0 0.0
    %1226 = vmatpush.msra.mxu0 0.0
    %1227 = vmatpush.msra.mxu0 0.0
    %1228 = vmatpush.msra.mxu0 %v1205
    %1229 = vmatmul.f32.gmra.mxu0 %v1208
    %v1230 = vpop.f32.mrf.mxu0
    %v1231 = vadd.f32 0.0, %v1230
    %1232 = vmatmul.f32.gmra.mxu0 %v1211
    %v1233 = vpop.f32.mrf.mxu0
    %v1234 = vadd.f32 0.0, %v1233
    %1235 = vdwg.mxu0
    %v1236 = vadd.f32 %v1195, %v1231
    %v1237 = vadd.f32 %v1196, %v1234
    %s1238 = scalar_lea.vmem %s1, 480
    %v1239 = vld [vmem:[%s1238] sm:$0xff]
    %v1240 = vld [vmem:[%s1238 + $0x8] sm:$0xff]
    %1241 = vrot.lane.b32.xlu0 %v15, 70
    %v1242 = vpop.permute.xlu0 %1241
    %1243 = vrot.lane.b32.xlu0 %v16, 70
    %v1244 = vpop.permute.xlu0 %1243
    %vm1245 = vcmask 572416
    %v1246 = vsel %vm1245, %v1242, %v1244
    %v1249 = vsel %vm31, %v1239, 0
    %v1252 = vsel %vm31, %v1240, 0
    %1254 = vmatpush.msra.mxu0 0.0
    %1255 = vmatpush.msra.mxu0 0.0
    %1256 = vmatpush.msra.mxu0 0.0
    %1257 = vmatpush.msra.mxu0 0.0
    %1258 = vmatpush.msra.mxu0 0.0
    %1259 = vmatpush.msra.mxu0 0.0
    %1260 = vmatpush.msra.mxu0 0.0
    %1261 = vmatpush.msra.mxu0 0.0
    %1262 = vmatpush.msra.mxu0 0.0
    %1263 = vmatpush.msra.mxu0 0.0
    %1264 = vmatpush.msra.mxu0 0.0
    %1265 = vmatpush.msra.mxu0 0.0
    %1266 = vmatpush.msra.mxu0 0.0
    %1267 = vmatpush.msra.mxu0 0.0
    %1268 = vmatpush.msra.mxu0 0.0
    %1269 = vmatpush.msra.mxu0 %v1246
    %1270 = vmatmul.f32.gmra.mxu0 %v1249
    %v1271 = vpop.f32.mrf.mxu0
    %v1272 = vadd.f32 0.0, %v1271
    %1273 = vmatmul.f32.gmra.mxu0 %v1252
    %v1274 = vpop.f32.mrf.mxu0
    %v1275 = vadd.f32 0.0, %v1274
    %1276 = vdwg.mxu0
    %v1277 = vadd.f32 %v1236, %v1272
    %v1278 = vadd.f32 %v1237, %v1275
    %s1279 = scalar_lea.vmem %s1, 496
    %v1280 = vld [vmem:[%s1279] sm:$0xff]
    %v1281 = vld [vmem:[%s1279 + $0x8] sm:$0xff]
    %1282 = vrot.lane.b32.xlu0 %v15, 69
    %v1283 = vpop.permute.xlu0 %1282
    %1284 = vrot.lane.b32.xlu0 %v16, 69
    %v1285 = vpop.permute.xlu0 %1284
    %vm1286 = vcmask 564224
    %v1287 = vsel %vm1286, %v1283, %v1285
    %v1290 = vsel %vm31, %v1280, 0
    %v1293 = vsel %vm31, %v1281, 0
    %1295 = vmatpush.msra.mxu0 0.0
    %1296 = vmatpush.msra.mxu0 0.0
    %1297 = vmatpush.msra.mxu0 0.0
    %1298 = vmatpush.msra.mxu0 0.0
    %1299 = vmatpush.msra.mxu0 0.0
    %1300 = vmatpush.msra.mxu0 0.0
    %1301 = vmatpush.msra.mxu0 0.0
    %1302 = vmatpush.msra.mxu0 0.0
    %1303 = vmatpush.msra.mxu0 0.0
    %1304 = vmatpush.msra.mxu0 0.0
    %1305 = vmatpush.msra.mxu0 0.0
    %1306 = vmatpush.msra.mxu0 0.0
    %1307 = vmatpush.msra.mxu0 0.0
    %1308 = vmatpush.msra.mxu0 0.0
    %1309 = vmatpush.msra.mxu0 0.0
    %1310 = vmatpush.msra.mxu0 %v1287
    %1311 = vmatmul.f32.gmra.mxu0 %v1290
    %v1312 = vpop.f32.mrf.mxu0
    %v1313 = vadd.f32 0.0, %v1312
    %1314 = vmatmul.f32.gmra.mxu0 %v1293
    %v1315 = vpop.f32.mrf.mxu0
    %v1316 = vadd.f32 0.0, %v1315
    %1317 = vdwg.mxu0
    %v1318 = vadd.f32 %v1277, %v1313
    %v1319 = vadd.f32 %v1278, %v1316
    %s1320 = scalar_lea.vmem %s1, 512
    %v1321 = vld [vmem:[%s1320] sm:$0xff]
    %v1322 = vld [vmem:[%s1320 + $0x8] sm:$0xff]
    %1323 = vrot.lane.b32.xlu0 %v15, 68
    %v1324 = vpop.permute.xlu0 %1323
    %1325 = vrot.lane.b32.xlu0 %v16, 68
    %v1326 = vpop.permute.xlu0 %1325
    %vm1327 = vcmask 556032
    %v1328 = vsel %vm1327, %v1324, %v1326
    %v1331 = vsel %vm31, %v1321, 0
    %v1334 = vsel %vm31, %v1322, 0
    %1336 = vmatpush.msra.mxu0 0.0
    %1337 = vmatpush.msra.mxu0 0.0
    %1338 = vmatpush.msra.mxu0 0.0
    %1339 = vmatpush.msra.mxu0 0.0
    %1340 = vmatpush.msra.mxu0 0.0
    %1341 = vmatpush.msra.mxu0 0.0
    %1342 = vmatpush.msra.mxu0 0.0
    %1343 = vmatpush.msra.mxu0 0.0
    %1344 = vmatpush.msra.mxu0 0.0
    %1345 = vmatpush.msra.mxu0 0.0
    %1346 = vmatpush.msra.mxu0 0.0
    %1347 = vmatpush.msra.mxu0 0.0
    %1348 = vmatpush.msra.mxu0 0.0
    %1349 = vmatpush.msra.mxu0 0.0
    %1350 = vmatpush.msra.mxu0 0.0
    %1351 = vmatpush.msra.mxu0 %v1328
    %1352 = vmatmul.f32.gmra.mxu0 %v1331
    %v1353 = vpop.f32.mrf.mxu0
    %v1354 = vadd.f32 0.0, %v1353
    %1355 = vmatmul.f32.gmra.mxu0 %v1334
    %v1356 = vpop.f32.mrf.mxu0
    %v1357 = vadd.f32 0.0, %v1356
    %1358 = vdwg.mxu0
    %v1359 = vadd.f32 %v1318, %v1354
    %v1360 = vadd.f32 %v1319, %v1357
    %s1361 = scalar_lea.vmem %s1, 528
    %v1362 = vld [vmem:[%s1361] sm:$0xff]
    %v1363 = vld [vmem:[%s1361 + $0x8] sm:$0xff]
    %1364 = vrot.lane.b32.xlu0 %v15, 67
    %v1365 = vpop.permute.xlu0 %1364
    %1366 = vrot.lane.b32.xlu0 %v16, 67
    %v1367 = vpop.permute.xlu0 %1366
    %vm1368 = vcmask 547840
    %v1369 = vsel %vm1368, %v1365, %v1367
    %v1372 = vsel %vm31, %v1362, 0
    %v1375 = vsel %vm31, %v1363, 0
    %1377 = vmatpush.msra.mxu0 0.0
    %1378 = vmatpush.msra.mxu0 0.0
    %1379 = vmatpush.msra.mxu0 0.0
    %1380 = vmatpush.msra.mxu0 0.0
    %1381 = vmatpush.msra.mxu0 0.0
    %1382 = vmatpush.msra.mxu0 0.0
    %1383 = vmatpush.msra.mxu0 0.0
    %1384 = vmatpush.msra.mxu0 0.0
    %1385 = vmatpush.msra.mxu0 0.0
    %1386 = vmatpush.msra.mxu0 0.0
    %1387 = vmatpush.msra.mxu0 0.0
    %1388 = vmatpush.msra.mxu0 0.0
    %1389 = vmatpush.msra.mxu0 0.0
    %1390 = vmatpush.msra.mxu0 0.0
    %1391 = vmatpush.msra.mxu0 0.0
    %1392 = vmatpush.msra.mxu0 %v1369
    %1393 = vmatmul.f32.gmra.mxu0 %v1372
    %v1394 = vpop.f32.mrf.mxu0
    %v1395 = vadd.f32 0.0, %v1394
    %1396 = vmatmul.f32.gmra.mxu0 %v1375
    %v1397 = vpop.f32.mrf.mxu0
    %v1398 = vadd.f32 0.0, %v1397
    %1399 = vdwg.mxu0
    %v1400 = vadd.f32 %v1359, %v1395
    %v1401 = vadd.f32 %v1360, %v1398
    %s1402 = scalar_lea.vmem %s1, 544
    %v1403 = vld [vmem:[%s1402] sm:$0xff]
    %v1404 = vld [vmem:[%s1402 + $0x8] sm:$0xff]
    %1405 = vrot.lane.b32.xlu0 %v15, 66
    %v1406 = vpop.permute.xlu0 %1405
    %1407 = vrot.lane.b32.xlu0 %v16, 66
    %v1408 = vpop.permute.xlu0 %1407
    %vm1409 = vcmask 539648
    %v1410 = vsel %vm1409, %v1406, %v1408
    %v1413 = vsel %vm31, %v1403, 0
    %v1416 = vsel %vm31, %v1404, 0
    %1418 = vmatpush.msra.mxu0 0.0
    %1419 = vmatpush.msra.mxu0 0.0
    %1420 = vmatpush.msra.mxu0 0.0
    %1421 = vmatpush.msra.mxu0 0.0
    %1422 = vmatpush.msra.mxu0 0.0
    %1423 = vmatpush.msra.mxu0 0.0
    %1424 = vmatpush.msra.mxu0 0.0
    %1425 = vmatpush.msra.mxu0 0.0
    %1426 = vmatpush.msra.mxu0 0.0
    %1427 = vmatpush.msra.mxu0 0.0
    %1428 = vmatpush.msra.mxu0 0.0
    %1429 = vmatpush.msra.mxu0 0.0
    %1430 = vmatpush.msra.mxu0 0.0
    %1431 = vmatpush.msra.mxu0 0.0
    %1432 = vmatpush.msra.mxu0 0.0
    %1433 = vmatpush.msra.mxu0 %v1410
    %1434 = vmatmul.f32.gmra.mxu0 %v1413
    %v1435 = vpop.f32.mrf.mxu0
    %v1436 = vadd.f32 0.0, %v1435
    %1437 = vmatmul.f32.gmra.mxu0 %v1416
    %v1438 = vpop.f32.mrf.mxu0
    %v1439 = vadd.f32 0.0, %v1438
    %1440 = vdwg.mxu0
    %v1441 = vadd.f32 %v1400, %v1436
    %v1442 = vadd.f32 %v1401, %v1439
    %s1443 = scalar_lea.vmem %s1, 560
    %v1444 = vld [vmem:[%s1443] sm:$0xff]
    %v1445 = vld [vmem:[%s1443 + $0x8] sm:$0xff]
    %1446 = vrot.lane.b32.xlu0 %v15, 58
    %v1447 = vpop.permute.xlu0 %1446
    %1448 = vrot.lane.b32.xlu0 %v16, 58
    %v1449 = vpop.permute.xlu0 %1448
    %vm1450 = vcmask 474112
    %v1451 = vsel %vm1450, %v1447, %v1449
    %v1454 = vsel %vm31, %v1444, 0
    %v1457 = vsel %vm31, %v1445, 0
    %1459 = vmatpush.msra.mxu0 0.0
    %1460 = vmatpush.msra.mxu0 0.0
    %1461 = vmatpush.msra.mxu0 0.0
    %1462 = vmatpush.msra.mxu0 0.0
    %1463 = vmatpush.msra.mxu0 0.0
    %1464 = vmatpush.msra.mxu0 0.0
    %1465 = vmatpush.msra.mxu0 0.0
    %1466 = vmatpush.msra.mxu0 0.0
    %1467 = vmatpush.msra.mxu0 0.0
    %1468 = vmatpush.msra.mxu0 0.0
    %1469 = vmatpush.msra.mxu0 0.0
    %1470 = vmatpush.msra.mxu0 0.0
    %1471 = vmatpush.msra.mxu0 0.0
    %1472 = vmatpush.msra.mxu0 0.0
    %1473 = vmatpush.msra.mxu0 0.0
    %1474 = vmatpush.msra.mxu0 %v1451
    %1475 = vmatmul.f32.gmra.mxu0 %v1454
    %v1476 = vpop.f32.mrf.mxu0
    %v1477 = vadd.f32 0.0, %v1476
    %1478 = vmatmul.f32.gmra.mxu0 %v1457
    %v1479 = vpop.f32.mrf.mxu0
    %v1480 = vadd.f32 0.0, %v1479
    %1481 = vdwg.mxu0
    %v1482 = vadd.f32 %v1441, %v1477
    %v1483 = vadd.f32 %v1442, %v1480
    %s1484 = scalar_lea.vmem %s1, 576
    %v1485 = vld [vmem:[%s1484] sm:$0xff]
    %v1486 = vld [vmem:[%s1484 + $0x8] sm:$0xff]
    %1487 = vrot.lane.b32.xlu0 %v15, 57
    %v1488 = vpop.permute.xlu0 %1487
    %1489 = vrot.lane.b32.xlu0 %v16, 57
    %v1490 = vpop.permute.xlu0 %1489
    %vm1491 = vcmask 465920
    %v1492 = vsel %vm1491, %v1488, %v1490
    %v1495 = vsel %vm31, %v1485, 0
    %v1498 = vsel %vm31, %v1486, 0
    %1500 = vmatpush.msra.mxu0 0.0
    %1501 = vmatpush.msra.mxu0 0.0
    %1502 = vmatpush.msra.mxu0 0.0
    %1503 = vmatpush.msra.mxu0 0.0
    %1504 = vmatpush.msra.mxu0 0.0
    %1505 = vmatpush.msra.mxu0 0.0
    %1506 = vmatpush.msra.mxu0 0.0
    %1507 = vmatpush.msra.mxu0 0.0
    %1508 = vmatpush.msra.mxu0 0.0
    %1509 = vmatpush.msra.mxu0 0.0
    %1510 = vmatpush.msra.mxu0 0.0
    %1511 = vmatpush.msra.mxu0 0.0
    %1512 = vmatpush.msra.mxu0 0.0
    %1513 = vmatpush.msra.mxu0 0.0
    %1514 = vmatpush.msra.mxu0 0.0
    %1515 = vmatpush.msra.mxu0 %v1492
    %1516 = vmatmul.f32.gmra.mxu0 %v1495
    %v1517 = vpop.f32.mrf.mxu0
    %v1518 = vadd.f32 0.0, %v1517
    %1519 = vmatmul.f32.gmra.mxu0 %v1498
    %v1520 = vpop.f32.mrf.mxu0
    %v1521 = vadd.f32 0.0, %v1520
    %1522 = vdwg.mxu0
    %v1523 = vadd.f32 %v1482, %v1518
    %v1524 = vadd.f32 %v1483, %v1521
    %s1525 = scalar_lea.vmem %s1, 592
    %v1526 = vld [vmem:[%s1525] sm:$0xff]
    %v1527 = vld [vmem:[%s1525 + $0x8] sm:$0xff]
    %1528 = vrot.lane.b32.xlu0 %v15, 56
    %v1529 = vpop.permute.xlu0 %1528
    %1530 = vrot.lane.b32.xlu0 %v16, 56
    %v1531 = vpop.permute.xlu0 %1530
    %vm1532 = vcmask 457728
    %v1533 = vsel %vm1532, %v1529, %v1531
    %v1536 = vsel %vm31, %v1526, 0
    %v1539 = vsel %vm31, %v1527, 0
    %1541 = vmatpush.msra.mxu0 0.0
    %1542 = vmatpush.msra.mxu0 0.0
    %1543 = vmatpush.msra.mxu0 0.0
    %1544 = vmatpush.msra.mxu0 0.0
    %1545 = vmatpush.msra.mxu0 0.0
    %1546 = vmatpush.msra.mxu0 0.0
    %1547 = vmatpush.msra.mxu0 0.0
    %1548 = vmatpush.msra.mxu0 0.0
    %1549 = vmatpush.msra.mxu0 0.0
    %1550 = vmatpush.msra.mxu0 0.0
    %1551 = vmatpush.msra.mxu0 0.0
    %1552 = vmatpush.msra.mxu0 0.0
    %1553 = vmatpush.msra.mxu0 0.0
    %1554 = vmatpush.msra.mxu0 0.0
    %1555 = vmatpush.msra.mxu0 0.0
    %1556 = vmatpush.msra.mxu0 %v1533
    %1557 = vmatmul.f32.gmra.mxu0 %v1536
    %v1558 = vpop.f32.mrf.mxu0
    %v1559 = vadd.f32 0.0, %v1558
    %1560 = vmatmul.f32.gmra.mxu0 %v1539
    %v1561 = vpop.f32.mrf.mxu0
    %v1562 = vadd.f32 0.0, %v1561
    %1563 = vdwg.mxu0
    %v1564 = vadd.f32 %v1523, %v1559
    %v1565 = vadd.f32 %v1524, %v1562
    %s1566 = scalar_lea.vmem %s1, 608
    %v1567 = vld [vmem:[%s1566] sm:$0xff]
    %v1568 = vld [vmem:[%s1566 + $0x8] sm:$0xff]
    %1569 = vrot.lane.b32.xlu0 %v15, 55
    %v1570 = vpop.permute.xlu0 %1569
    %1571 = vrot.lane.b32.xlu0 %v16, 55
    %v1572 = vpop.permute.xlu0 %1571
    %vm1573 = vcmask 449536
    %v1574 = vsel %vm1573, %v1570, %v1572
    %v1577 = vsel %vm31, %v1567, 0
    %v1580 = vsel %vm31, %v1568, 0
    %1582 = vmatpush.msra.mxu0 0.0
    %1583 = vmatpush.msra.mxu0 0.0
    %1584 = vmatpush.msra.mxu0 0.0
    %1585 = vmatpush.msra.mxu0 0.0
    %1586 = vmatpush.msra.mxu0 0.0
    %1587 = vmatpush.msra.mxu0 0.0
    %1588 = vmatpush.msra.mxu0 0.0
    %1589 = vmatpush.msra.mxu0 0.0
    %1590 = vmatpush.msra.mxu0 0.0
    %1591 = vmatpush.msra.mxu0 0.0
    %1592 = vmatpush.msra.mxu0 0.0
    %1593 = vmatpush.msra.mxu0 0.0
    %1594 = vmatpush.msra.mxu0 0.0
    %1595 = vmatpush.msra.mxu0 0.0
    %1596 = vmatpush.msra.mxu0 0.0
    %1597 = vmatpush.msra.mxu0 %v1574
    %1598 = vmatmul.f32.gmra.mxu0 %v1577
    %v1599 = vpop.f32.mrf.mxu0
    %v1600 = vadd.f32 0.0, %v1599
    %1601 = vmatmul.f32.gmra.mxu0 %v1580
    %v1602 = vpop.f32.mrf.mxu0
    %v1603 = vadd.f32 0.0, %v1602
    %1604 = vdwg.mxu0
    %v1605 = vadd.f32 %v1564, %v1600
    %v1606 = vadd.f32 %v1565, %v1603
    %s1607 = scalar_lea.vmem %s1, 624
    %v1608 = vld [vmem:[%s1607] sm:$0xff]
    %v1609 = vld [vmem:[%s1607 + $0x8] sm:$0xff]
    %1610 = vrot.lane.b32.xlu0 %v15, 54
    %v1611 = vpop.permute.xlu0 %1610
    %1612 = vrot.lane.b32.xlu0 %v16, 54
    %v1613 = vpop.permute.xlu0 %1612
    %vm1614 = vcmask 441344
    %v1615 = vsel %vm1614, %v1611, %v1613
    %v1618 = vsel %vm31, %v1608, 0
    %v1621 = vsel %vm31, %v1609, 0
    %1623 = vmatpush.msra.mxu0 0.0
    %1624 = vmatpush.msra.mxu0 0.0
    %1625 = vmatpush.msra.mxu0 0.0
    %1626 = vmatpush.msra.mxu0 0.0
    %1627 = vmatpush.msra.mxu0 0.0
    %1628 = vmatpush.msra.mxu0 0.0
    %1629 = vmatpush.msra.mxu0 0.0
    %1630 = vmatpush.msra.mxu0 0.0
    %1631 = vmatpush.msra.mxu0 0.0
    %1632 = vmatpush.msra.mxu0 0.0
    %1633 = vmatpush.msra.mxu0 0.0
    %1634 = vmatpush.msra.mxu0 0.0
    %1635 = vmatpush.msra.mxu0 0.0
    %1636 = vmatpush.msra.mxu0 0.0
    %1637 = vmatpush.msra.mxu0 0.0
    %1638 = vmatpush.msra.mxu0 %v1615
    %1639 = vmatmul.f32.gmra.mxu0 %v1618
    %v1640 = vpop.f32.mrf.mxu0
    %v1641 = vadd.f32 0.0, %v1640
    %1642 = vmatmul.f32.gmra.mxu0 %v1621
    %v1643 = vpop.f32.mrf.mxu0
    %v1644 = vadd.f32 0.0, %v1643
    %1645 = vdwg.mxu0
    %v1646 = vadd.f32 %v1605, %v1641
    %v1647 = vadd.f32 %v1606, %v1644
    %s1648 = scalar_lea.vmem %s1, 640
    %v1649 = vld [vmem:[%s1648] sm:$0xff]
    %v1650 = vld [vmem:[%s1648 + $0x8] sm:$0xff]
    %1651 = vrot.lane.b32.xlu0 %v15, 53
    %v1652 = vpop.permute.xlu0 %1651
    %1653 = vrot.lane.b32.xlu0 %v16, 53
    %v1654 = vpop.permute.xlu0 %1653
    %vm1655 = vcmask 433152
    %v1656 = vsel %vm1655, %v1652, %v1654
    %v1659 = vsel %vm31, %v1649, 0
    %v1662 = vsel %vm31, %v1650, 0
    %1664 = vmatpush.msra.mxu0 0.0
    %1665 = vmatpush.msra.mxu0 0.0
    %1666 = vmatpush.msra.mxu0 0.0
    %1667 = vmatpush.msra.mxu0 0.0
    %1668 = vmatpush.msra.mxu0 0.0
    %1669 = vmatpush.msra.mxu0 0.0
    %1670 = vmatpush.msra.mxu0 0.0
    %1671 = vmatpush.msra.mxu0 0.0
    %1672 = vmatpush.msra.mxu0 0.0
    %1673 = vmatpush.msra.mxu0 0.0
    %1674 = vmatpush.msra.mxu0 0.0
    %1675 = vmatpush.msra.mxu0 0.0
    %1676 = vmatpush.msra.mxu0 0.0
    %1677 = vmatpush.msra.mxu0 0.0
    %1678 = vmatpush.msra.mxu0 0.0
    %1679 = vmatpush.msra.mxu0 %v1656
    %1680 = vmatmul.f32.gmra.mxu0 %v1659
    %v1681 = vpop.f32.mrf.mxu0
    %v1682 = vadd.f32 0.0, %v1681
    %1683 = vmatmul.f32.gmra.mxu0 %v1662
    %v1684 = vpop.f32.mrf.mxu0
    %v1685 = vadd.f32 0.0, %v1684
    %1686 = vdwg.mxu0
    %v1687 = vadd.f32 %v1646, %v1682
    %v1688 = vadd.f32 %v1647, %v1685
    %s1689 = scalar_lea.vmem %s1, 656
    %v1690 = vld [vmem:[%s1689] sm:$0xff]
    %v1691 = vld [vmem:[%s1689 + $0x8] sm:$0xff]
    %1692 = vrot.lane.b32.xlu0 %v15, 52
    %v1693 = vpop.permute.xlu0 %1692
    %1694 = vrot.lane.b32.xlu0 %v16, 52
    %v1695 = vpop.permute.xlu0 %1694
    %vm1696 = vcmask 424960
    %v1697 = vsel %vm1696, %v1693, %v1695
    %v1700 = vsel %vm31, %v1690, 0
    %v1703 = vsel %vm31, %v1691, 0
    %1705 = vmatpush.msra.mxu0 0.0
    %1706 = vmatpush.msra.mxu0 0.0
    %1707 = vmatpush.msra.mxu0 0.0
    %1708 = vmatpush.msra.mxu0 0.0
    %1709 = vmatpush.msra.mxu0 0.0
    %1710 = vmatpush.msra.mxu0 0.0
    %1711 = vmatpush.msra.mxu0 0.0
    %1712 = vmatpush.msra.mxu0 0.0
    %1713 = vmatpush.msra.mxu0 0.0
    %1714 = vmatpush.msra.mxu0 0.0
    %1715 = vmatpush.msra.mxu0 0.0
    %1716 = vmatpush.msra.mxu0 0.0
    %1717 = vmatpush.msra.mxu0 0.0
    %1718 = vmatpush.msra.mxu0 0.0
    %1719 = vmatpush.msra.mxu0 0.0
    %1720 = vmatpush.msra.mxu0 %v1697
    %1721 = vmatmul.f32.gmra.mxu0 %v1700
    %v1722 = vpop.f32.mrf.mxu0
    %v1723 = vadd.f32 0.0, %v1722
    %1724 = vmatmul.f32.gmra.mxu0 %v1703
    %v1725 = vpop.f32.mrf.mxu0
    %v1726 = vadd.f32 0.0, %v1725
    %1727 = vdwg.mxu0
    %v1728 = vadd.f32 %v1687, %v1723
    %v1729 = vadd.f32 %v1688, %v1726
    %s1730 = scalar_lea.vmem %s1, 672
    %v1731 = vld [vmem:[%s1730] sm:$0xff]
    %v1732 = vld [vmem:[%s1730 + $0x8] sm:$0xff]
    %1733 = vrot.lane.b32.xlu0 %v15, 44
    %v1734 = vpop.permute.xlu0 %1733
    %1735 = vrot.lane.b32.xlu0 %v16, 44
    %v1736 = vpop.permute.xlu0 %1735
    %vm1737 = vcmask 359424
    %v1738 = vsel %vm1737, %v1734, %v1736
    %v1741 = vsel %vm31, %v1731, 0
    %v1744 = vsel %vm31, %v1732, 0
    %1746 = vmatpush.msra.mxu0 0.0
    %1747 = vmatpush.msra.mxu0 0.0
    %1748 = vmatpush.msra.mxu0 0.0
    %1749 = vmatpush.msra.mxu0 0.0
    %1750 = vmatpush.msra.mxu0 0.0
    %1751 = vmatpush.msra.mxu0 0.0
    %1752 = vmatpush.msra.mxu0 0.0
    %1753 = vmatpush.msra.mxu0 0.0
    %1754 = vmatpush.msra.mxu0 0.0
    %1755 = vmatpush.msra.mxu0 0.0
    %1756 = vmatpush.msra.mxu0 0.0
    %1757 = vmatpush.msra.mxu0 0.0
    %1758 = vmatpush.msra.mxu0 0.0
    %1759 = vmatpush.msra.mxu0 0.0
    %1760 = vmatpush.msra.mxu0 0.0
    %1761 = vmatpush.msra.mxu0 %v1738
    %1762 = vmatmul.f32.gmra.mxu0 %v1741
    %v1763 = vpop.f32.mrf.mxu0
    %v1764 = vadd.f32 0.0, %v1763
    %1765 = vmatmul.f32.gmra.mxu0 %v1744
    %v1766 = vpop.f32.mrf.mxu0
    %v1767 = vadd.f32 0.0, %v1766
    %1768 = vdwg.mxu0
    %v1769 = vadd.f32 %v1728, %v1764
    %v1770 = vadd.f32 %v1729, %v1767
    %s1771 = scalar_lea.vmem %s1, 688
    %v1772 = vld [vmem:[%s1771] sm:$0xff]
    %v1773 = vld [vmem:[%s1771 + $0x8] sm:$0xff]
    %1774 = vrot.lane.b32.xlu0 %v15, 43
    %v1775 = vpop.permute.xlu0 %1774
    %1776 = vrot.lane.b32.xlu0 %v16, 43
    %v1777 = vpop.permute.xlu0 %1776
    %vm1778 = vcmask 351232
    %v1779 = vsel %vm1778, %v1775, %v1777
    %v1782 = vsel %vm31, %v1772, 0
    %v1785 = vsel %vm31, %v1773, 0
    %1787 = vmatpush.msra.mxu0 0.0
    %1788 = vmatpush.msra.mxu0 0.0
    %1789 = vmatpush.msra.mxu0 0.0
    %1790 = vmatpush.msra.mxu0 0.0
    %1791 = vmatpush.msra.mxu0 0.0
    %1792 = vmatpush.msra.mxu0 0.0
    %1793 = vmatpush.msra.mxu0 0.0
    %1794 = vmatpush.msra.mxu0 0.0
    %1795 = vmatpush.msra.mxu0 0.0
    %1796 = vmatpush.msra.mxu0 0.0
    %1797 = vmatpush.msra.mxu0 0.0
    %1798 = vmatpush.msra.mxu0 0.0
    %1799 = vmatpush.msra.mxu0 0.0
    %1800 = vmatpush.msra.mxu0 0.0
    %1801 = vmatpush.msra.mxu0 0.0
    %1802 = vmatpush.msra.mxu0 %v1779
    %1803 = vmatmul.f32.gmra.mxu0 %v1782
    %v1804 = vpop.f32.mrf.mxu0
    %v1805 = vadd.f32 0.0, %v1804
    %1806 = vmatmul.f32.gmra.mxu0 %v1785
    %v1807 = vpop.f32.mrf.mxu0
    %v1808 = vadd.f32 0.0, %v1807
    %1809 = vdwg.mxu0
    %v1810 = vadd.f32 %v1769, %v1805
    %v1811 = vadd.f32 %v1770, %v1808
    %s1812 = scalar_lea.vmem %s1, 704
    %v1813 = vld [vmem:[%s1812] sm:$0xff]
    %v1814 = vld [vmem:[%s1812 + $0x8] sm:$0xff]
    %1815 = vrot.lane.b32.xlu0 %v15, 42
    %v1816 = vpop.permute.xlu0 %1815
    %1817 = vrot.lane.b32.xlu0 %v16, 42
    %v1818 = vpop.permute.xlu0 %1817
    %vm1819 = vcmask 343040
    %v1820 = vsel %vm1819, %v1816, %v1818
    %v1823 = vsel %vm31, %v1813, 0
    %v1826 = vsel %vm31, %v1814, 0
    %1828 = vmatpush.msra.mxu0 0.0
    %1829 = vmatpush.msra.mxu0 0.0
    %1830 = vmatpush.msra.mxu0 0.0
    %1831 = vmatpush.msra.mxu0 0.0
    %1832 = vmatpush.msra.mxu0 0.0
    %1833 = vmatpush.msra.mxu0 0.0
    %1834 = vmatpush.msra.mxu0 0.0
    %1835 = vmatpush.msra.mxu0 0.0
    %1836 = vmatpush.msra.mxu0 0.0
    %1837 = vmatpush.msra.mxu0 0.0
    %1838 = vmatpush.msra.mxu0 0.0
    %1839 = vmatpush.msra.mxu0 0.0
    %1840 = vmatpush.msra.mxu0 0.0
    %1841 = vmatpush.msra.mxu0 0.0
    %1842 = vmatpush.msra.mxu0 0.0
    %1843 = vmatpush.msra.mxu0 %v1820
    %1844 = vmatmul.f32.gmra.mxu0 %v1823
    %v1845 = vpop.f32.mrf.mxu0
    %v1846 = vadd.f32 0.0, %v1845
    %1847 = vmatmul.f32.gmra.mxu0 %v1826
    %v1848 = vpop.f32.mrf.mxu0
    %v1849 = vadd.f32 0.0, %v1848
    %1850 = vdwg.mxu0
    %v1851 = vadd.f32 %v1810, %v1846
    %v1852 = vadd.f32 %v1811, %v1849
    %s1853 = scalar_lea.vmem %s1, 720
    %v1854 = vld [vmem:[%s1853] sm:$0xff]
    %v1855 = vld [vmem:[%s1853 + $0x8] sm:$0xff]
    %1856 = vrot.lane.b32.xlu0 %v15, 41
    %v1857 = vpop.permute.xlu0 %1856
    %1858 = vrot.lane.b32.xlu0 %v16, 41
    %v1859 = vpop.permute.xlu0 %1858
    %vm1860 = vcmask 334848
    %v1861 = vsel %vm1860, %v1857, %v1859
    %v1864 = vsel %vm31, %v1854, 0
    %v1867 = vsel %vm31, %v1855, 0
    %1869 = vmatpush.msra.mxu0 0.0
    %1870 = vmatpush.msra.mxu0 0.0
    %1871 = vmatpush.msra.mxu0 0.0
    %1872 = vmatpush.msra.mxu0 0.0
    %1873 = vmatpush.msra.mxu0 0.0
    %1874 = vmatpush.msra.mxu0 0.0
    %1875 = vmatpush.msra.mxu0 0.0
    %1876 = vmatpush.msra.mxu0 0.0
    %1877 = vmatpush.msra.mxu0 0.0
    %1878 = vmatpush.msra.mxu0 0.0
    %1879 = vmatpush.msra.mxu0 0.0
    %1880 = vmatpush.msra.mxu0 0.0
    %1881 = vmatpush.msra.mxu0 0.0
    %1882 = vmatpush.msra.mxu0 0.0
    %1883 = vmatpush.msra.mxu0 0.0
    %1884 = vmatpush.msra.mxu0 %v1861
    %1885 = vmatmul.f32.gmra.mxu0 %v1864
    %v1886 = vpop.f32.mrf.mxu0
    %v1887 = vadd.f32 0.0, %v1886
    %1888 = vmatmul.f32.gmra.mxu0 %v1867
    %v1889 = vpop.f32.mrf.mxu0
    %v1890 = vadd.f32 0.0, %v1889
    %1891 = vdwg.mxu0
    %v1892 = vadd.f32 %v1851, %v1887
    %v1893 = vadd.f32 %v1852, %v1890
    %s1894 = scalar_lea.vmem %s1, 736
    %v1895 = vld [vmem:[%s1894] sm:$0xff]
    %v1896 = vld [vmem:[%s1894 + $0x8] sm:$0xff]
    %1897 = vrot.lane.b32.xlu0 %v15, 40
    %v1898 = vpop.permute.xlu0 %1897
    %1899 = vrot.lane.b32.xlu0 %v16, 40
    %v1900 = vpop.permute.xlu0 %1899
    %vm1901 = vcmask 326656
    %v1902 = vsel %vm1901, %v1898, %v1900
    %v1905 = vsel %vm31, %v1895, 0
    %v1908 = vsel %vm31, %v1896, 0
    %1910 = vmatpush.msra.mxu0 0.0
    %1911 = vmatpush.msra.mxu0 0.0
    %1912 = vmatpush.msra.mxu0 0.0
    %1913 = vmatpush.msra.mxu0 0.0
    %1914 = vmatpush.msra.mxu0 0.0
    %1915 = vmatpush.msra.mxu0 0.0
    %1916 = vmatpush.msra.mxu0 0.0
    %1917 = vmatpush.msra.mxu0 0.0
    %1918 = vmatpush.msra.mxu0 0.0
    %1919 = vmatpush.msra.mxu0 0.0
    %1920 = vmatpush.msra.mxu0 0.0
    %1921 = vmatpush.msra.mxu0 0.0
    %1922 = vmatpush.msra.mxu0 0.0
    %1923 = vmatpush.msra.mxu0 0.0
    %1924 = vmatpush.msra.mxu0 0.0
    %1925 = vmatpush.msra.mxu0 %v1902
    %1926 = vmatmul.f32.gmra.mxu0 %v1905
    %v1927 = vpop.f32.mrf.mxu0
    %v1928 = vadd.f32 0.0, %v1927
    %1929 = vmatmul.f32.gmra.mxu0 %v1908
    %v1930 = vpop.f32.mrf.mxu0
    %v1931 = vadd.f32 0.0, %v1930
    %1932 = vdwg.mxu0
    %v1933 = vadd.f32 %v1892, %v1928
    %v1934 = vadd.f32 %v1893, %v1931
    %s1935 = scalar_lea.vmem %s1, 752
    %v1936 = vld [vmem:[%s1935] sm:$0xff]
    %v1937 = vld [vmem:[%s1935 + $0x8] sm:$0xff]
    %1938 = vrot.lane.b32.xlu0 %v15, 39
    %v1939 = vpop.permute.xlu0 %1938
    %1940 = vrot.lane.b32.xlu0 %v16, 39
    %v1941 = vpop.permute.xlu0 %1940
    %vm1942 = vcmask 318464
    %v1943 = vsel %vm1942, %v1939, %v1941
    %v1946 = vsel %vm31, %v1936, 0
    %v1949 = vsel %vm31, %v1937, 0
    %1951 = vmatpush.msra.mxu0 0.0
    %1952 = vmatpush.msra.mxu0 0.0
    %1953 = vmatpush.msra.mxu0 0.0
    %1954 = vmatpush.msra.mxu0 0.0
    %1955 = vmatpush.msra.mxu0 0.0
    %1956 = vmatpush.msra.mxu0 0.0
    %1957 = vmatpush.msra.mxu0 0.0
    %1958 = vmatpush.msra.mxu0 0.0
    %1959 = vmatpush.msra.mxu0 0.0
    %1960 = vmatpush.msra.mxu0 0.0
    %1961 = vmatpush.msra.mxu0 0.0
    %1962 = vmatpush.msra.mxu0 0.0
    %1963 = vmatpush.msra.mxu0 0.0
    %1964 = vmatpush.msra.mxu0 0.0
    %1965 = vmatpush.msra.mxu0 0.0
    %1966 = vmatpush.msra.mxu0 %v1943
    %1967 = vmatmul.f32.gmra.mxu0 %v1946
    %v1968 = vpop.f32.mrf.mxu0
    %v1969 = vadd.f32 0.0, %v1968
    %1970 = vmatmul.f32.gmra.mxu0 %v1949
    %v1971 = vpop.f32.mrf.mxu0
    %v1972 = vadd.f32 0.0, %v1971
    %1973 = vdwg.mxu0
    %v1974 = vadd.f32 %v1933, %v1969
    %v1975 = vadd.f32 %v1934, %v1972
    %s1976 = scalar_lea.vmem %s1, 768
    %v1977 = vld [vmem:[%s1976] sm:$0xff]
    %v1978 = vld [vmem:[%s1976 + $0x8] sm:$0xff]
    %1979 = vrot.lane.b32.xlu0 %v15, 38
    %v1980 = vpop.permute.xlu0 %1979
    %1981 = vrot.lane.b32.xlu0 %v16, 38
    %v1982 = vpop.permute.xlu0 %1981
    %vm1983 = vcmask 310272
    %v1984 = vsel %vm1983, %v1980, %v1982
    %v1987 = vsel %vm31, %v1977, 0
    %v1990 = vsel %vm31, %v1978, 0
    %1992 = vmatpush.msra.mxu0 0.0
    %1993 = vmatpush.msra.mxu0 0.0
    %1994 = vmatpush.msra.mxu0 0.0
    %1995 = vmatpush.msra.mxu0 0.0
    %1996 = vmatpush.msra.mxu0 0.0
    %1997 = vmatpush.msra.mxu0 0.0
    %1998 = vmatpush.msra.mxu0 0.0
    %1999 = vmatpush.msra.mxu0 0.0
    %2000 = vmatpush.msra.mxu0 0.0
    %2001 = vmatpush.msra.mxu0 0.0
    %2002 = vmatpush.msra.mxu0 0.0
    %2003 = vmatpush.msra.mxu0 0.0
    %2004 = vmatpush.msra.mxu0 0.0
    %2005 = vmatpush.msra.mxu0 0.0
    %2006 = vmatpush.msra.mxu0 0.0
    %2007 = vmatpush.msra.mxu0 %v1984
    %2008 = vmatmul.f32.gmra.mxu0 %v1987
    %v2009 = vpop.f32.mrf.mxu0
    %v2010 = vadd.f32 0.0, %v2009
    %2011 = vmatmul.f32.gmra.mxu0 %v1990
    %v2012 = vpop.f32.mrf.mxu0
    %v2013 = vadd.f32 0.0, %v2012
    %2014 = vdwg.mxu0
    %v2015 = vadd.f32 %v1974, %v2010
    %v2016 = vadd.f32 %v1975, %v2013
    %v2017 = vld [vmem:[%s2] sm:$0xff]
    %v2018 = vld [vmem:[%s2 + $0x8] sm:$0xff]
    %2020 = vset.pattern.permute.xlu0 0
    %2021 = vperm.xlu0 %2020, %v2017
    %v2022 = vpop.permute.xlu0 %2021
    %2025 = vset.pattern.permute.xlu0 0
    %2026 = vperm.xlu0 %2025, %v2018
    %v2027 = vpop.permute.xlu0 %2026
    %v2029 = vadd.f32 %v2015, %v2022
    %v2030 = vadd.f32 %v2016, %v2027
    %v2031 = vmax.f32 %v2029, 0.0
    %v2032 = vmax.f32 %v2030, 0.0
    %v2033 = vxor.u32 %v2031, 2147483648
    %v2034 = vxor.u32 %v2032, 2147483648
    %v2035 = vmul.f32 %v2033, 1.442695
    %v2036 = vpow.pop %v2035
    %v2037 = vmul.f32 %v2034, 1.442695
    %v2038 = vpow.pop %v2037
    %v2039 = vadd.f32 %v2036, 1.0
    %v2040 = vadd.f32 %v2038, 1.0
    %v2041 = vrcp.pop %v2039
    %v2042 = vmul.f32 %v2039, %v2041
    %v2043 = vsub.f32 1.0, %v2042
    %v2044 = vmul.f32 %v2041, %v2043
    %v2045 = vadd.f32 %v2041, %v2044
    %vm2046 = vweird.f32 %v2039
    %vm2047 = vweird.f32 %v2041
    %vm2048 = vmor %vm2046, %vm2047
    %v2049 = vsel %vm2048, %v2041, %v2045
    %v2050 = vand.u32 2147483647, %v2039
    %vm2051 = vcmp.eq.f32.partialorder %v2050, 8.507059e+37
    %v2052 = vand.u32 %v2039, 2147483648
    %v2053 = vor.u32 1.1754944e-38, %v2052
    %v2054 = vsel %vm2051, %v2053, %v2049
    %v2055 = vmul.f32 1.0, %v2054
    %v2056 = vrcp.pop %v2040
    %v2057 = vmul.f32 %v2040, %v2056
    %v2058 = vsub.f32 1.0, %v2057
    %v2059 = vmul.f32 %v2056, %v2058
    %v2060 = vadd.f32 %v2056, %v2059
    %vm2061 = vweird.f32 %v2040
    %vm2062 = vweird.f32 %v2056
    %vm2063 = vmor %vm2061, %vm2062
    %v2064 = vsel %vm2063, %v2056, %v2060
    %v2065 = vand.u32 2147483647, %v2040
    %vm2066 = vcmp.eq.f32.partialorder %v2065, 8.507059e+37
    %v2067 = vand.u32 %v2040, 2147483648
    %v2068 = vor.u32 1.1754944e-38, %v2067
    %v2069 = vsel %vm2066, %v2068, %v2064
    %v2070 = vmul.f32 1.0, %v2069
    %v2071 = vtanh.pop %v2055
    %v2072 = vtanh.pop %v2070
    %v2073 = vtanh.pop %v2071
    %v2074 = vtanh.pop %v2072
    %2075 = vst.msk [vmem:[#allocation2] sm:$0xff] %vm31, %v2073
    %2076 = vst.msk [vmem:[#allocation2 + $0x8] sm:$0xff] %vm31, %v2074
    %2079 = vrot.lane.b32.xlu0 %v2073, 122
    %v2080 = vpop.permute.xlu0 %2079
    %2081 = vrot.lane.b32.xlu0 %v2074, 122
    %v2082 = vpop.permute.xlu0 %2081
    %vm2085 = vcmask 130112
    %2086 = vst.msk [vmem:[#allocation2] sm:$0xff] %vm2085, %v2080
    %2087 = vst.msk [vmem:[#allocation2 + $0x8] sm:$0xff] %vm2085, %v2082
    %2088 = vrot.lane.b32.xlu0 %v2073, 116
    %v2089 = vpop.permute.xlu0 %2088
    %2090 = vrot.lane.b32.xlu0 %v2074, 116
    %v2091 = vpop.permute.xlu0 %2090
    %vm2094 = vcmask 195712
    %2095 = vst.msk [vmem:[#allocation2] sm:$0xff] %vm2094, %v2089
    %2096 = vst.msk [vmem:[#allocation2 + $0x8] sm:$0xff] %vm2094, %v2091
    %2097 = vrot.lane.b32.xlu0 %v2073, 110
    %v2098 = vpop.permute.xlu0 %2097
    %2099 = vrot.lane.b32.xlu0 %v2074, 110
    %v2100 = vpop.permute.xlu0 %2099
    %vm2103 = vcmask 261312
    %2104 = vst.msk [vmem:[#allocation2] sm:$0xff] %vm2103, %v2098
    %2105 = vst.msk [vmem:[#allocation2 + $0x8] sm:$0xff] %vm2103, %v2100
    %2106 = vrot.lane.b32.xlu0 %v2073, 104
    %v2107 = vpop.permute.xlu0 %2106
    %2108 = vrot.lane.b32.xlu0 %v2074, 104
    %v2109 = vpop.permute.xlu0 %2108
    %vm2112 = vcmask 326912
    %2113 = vst.msk [vmem:[#allocation2] sm:$0xff] %vm2112, %v2107
    %2114 = vst.msk [vmem:[#allocation2 + $0x8] sm:$0xff] %vm2112, %v2109
    %2115 = vrot.lane.b32.xlu0 %v2073, 98
    %v2116 = vpop.permute.xlu0 %2115
    %2117 = vrot.lane.b32.xlu0 %v2074, 98
    %v2118 = vpop.permute.xlu0 %2117
    %vm2121 = vcmask 392512
    %2122 = vst.msk [vmem:[#allocation2] sm:$0xff] %vm2121, %v2116
    %2123 = vst.msk [vmem:[#allocation2 + $0x8] sm:$0xff] %vm2121, %v2118
    %2124 = vrot.lane.b32.xlu0 %v2073, 92
    %v2125 = vpop.permute.xlu0 %2124
    %2126 = vrot.lane.b32.xlu0 %v2074, 92
    %v2127 = vpop.permute.xlu0 %2126
    %vm2130 = vcmask 458112
    %2131 = vst.msk [vmem:[#allocation2] sm:$0xff] %vm2130, %v2125
    %2132 = vst.msk [vmem:[#allocation2 + $0x8] sm:$0xff] %vm2130, %v2127
    %2133 = vrot.lane.b32.xlu0 %v2073, 86
    %v2134 = vpop.permute.xlu0 %2133
    %2135 = vrot.lane.b32.xlu0 %v2074, 86
    %v2136 = vpop.permute.xlu0 %2135
    %vm2139 = vcmask 523712
    %2140 = vst.msk [vmem:[#allocation2] sm:$0xff] %vm2139, %v2134
    %2141 = vst.msk [vmem:[#allocation2 + $0x8] sm:$0xff] %vm2139, %v2136
    %v2142 = vld [vmem:[#allocation2] sm:$0x1]
    %v2143 = vlaneseq
    %vm2144 = vcmp.ge.s32.totalorder %v2143, 0
    %vm2145 = vcmp.lt.s32.totalorder %v2143, 64
    %vm2146 = vmand %vm2144, %vm2145
    %2147 = vst.msk [vmem:[#allocation3] sm:$0x1] %vm2146, %v2142
    %v2148 = vld [vmem:[#allocation2 + $0x1] sm:$0x1]
    %2150 = vrot.lane.b32.xlu0 %v2148, 64
    %v2151 = vpop.permute.xlu0 %2150
    %vm2153 = vcmp.ge.s32.totalorder %v2143, 64
    %vm2154 = vcmp.lt.s32.totalorder %v2143, 128
    %vm2155 = vmand %vm2153, %vm2154
    %2156 = vst.msk [vmem:[#allocation3] sm:$0x1] %vm2155, %v2151
    %v2157 = vld [vmem:[#allocation2 + $0x2] sm:$0x1]
    %2158 = vst.msk [vmem:[#allocation3 + $0x1] sm:$0x1] %vm2146, %v2157
    %v2159 = vld [vmem:[#allocation2 + $0x3] sm:$0x1]
    %2161 = vrot.lane.b32.xlu0 %v2159, 64
    %v2162 = vpop.permute.xlu0 %2161
    %2164 = vst.msk [vmem:[#allocation3 + $0x1] sm:$0x1] %vm2155, %v2162
    %v2165 = vld [vmem:[#allocation2 + $0x4] sm:$0x1]
    %2166 = vst.msk [vmem:[#allocation3 + $0x2] sm:$0x1] %vm2146, %v2165
    %v2167 = vld [vmem:[#allocation2 + $0x5] sm:$0x1]
    %2169 = vrot.lane.b32.xlu0 %v2167, 64
    %v2170 = vpop.permute.xlu0 %2169
    %2172 = vst.msk [vmem:[#allocation3 + $0x2] sm:$0x1] %vm2155, %v2170
    %v2173 = vld [vmem:[#allocation2 + $0x6] sm:$0x1]
    %2174 = vst.msk [vmem:[#allocation3 + $0x3] sm:$0x1] %vm2146, %v2173
    %v2175 = vld [vmem:[#allocation2 + $0x7] sm:$0x1]
    %2177 = vrot.lane.b32.xlu0 %v2175, 64
    %v2178 = vpop.permute.xlu0 %2177
    %2180 = vst.msk [vmem:[#allocation3 + $0x3] sm:$0x1] %vm2155, %v2178
    %v2181 = vld [vmem:[#allocation2 + $0x8] sm:$0x1]
    %2182 = vst.msk [vmem:[#allocation3 + $0x4] sm:$0x1] %vm2146, %v2181
    %v2183 = vld [vmem:[#allocation2 + $0x9] sm:$0x1]
    %2185 = vrot.lane.b32.xlu0 %v2183, 64
    %v2186 = vpop.permute.xlu0 %2185
    %2188 = vst.msk [vmem:[#allocation3 + $0x4] sm:$0x1] %vm2155, %v2186
    %v2189 = vld [vmem:[#allocation2 + $0xa] sm:$0x1]
    %2190 = vst.msk [vmem:[#allocation3 + $0x5] sm:$0x1] %vm2146, %v2189
    %v2191 = vld [vmem:[#allocation2 + $0xb] sm:$0x1]
    %2193 = vrot.lane.b32.xlu0 %v2191, 64
    %v2194 = vpop.permute.xlu0 %2193
    %2196 = vst.msk [vmem:[#allocation3 + $0x5] sm:$0x1] %vm2155, %v2194
    %v2197 = vld [vmem:[#allocation2 + $0xc] sm:$0x1]
    %2198 = vst.msk [vmem:[#allocation3 + $0x6] sm:$0x1] %vm2146, %v2197
    %v2199 = vld [vmem:[#allocation2 + $0xd] sm:$0x1]
    %2201 = vrot.lane.b32.xlu0 %v2199, 64
    %v2202 = vpop.permute.xlu0 %2201
    %2204 = vst.msk [vmem:[#allocation3 + $0x6] sm:$0x1] %vm2155, %v2202
    %v2205 = vld [vmem:[#allocation2 + $0xe] sm:$0x1]
    %2206 = vst.msk [vmem:[#allocation3 + $0x7] sm:$0x1] %vm2146, %v2205
    %v2207 = vld [vmem:[#allocation2 + $0xf] sm:$0x1]
    %2209 = vrot.lane.b32.xlu0 %v2207, 64
    %v2210 = vpop.permute.xlu0 %2209
    %2212 = vst.msk [vmem:[#allocation3 + $0x7] sm:$0x1] %vm2155, %v2210
    // Predicated region
    $region14: #{model_forward.1} parent=1 // pred_check
      _
    $region15: #{model_forward.1} parent=1 // pred_check_branch
      %2214 = sbr.rel (0) target = $region17
    $region16: #{model_forward.1} parent=1 // pred_region
      %2216 = vsyncadd [#allocation4], 0
      %s2218 = sshll.u32 [#allocation3], 4
      %s2219 = int_to_ptr.vmem [resolvable:$true] %s2218
      %s2220 = sshll.u32 %s3, 4
      %s2221 = int_to_ptr.hbm [resolvable:$true] %s2220
      %2223 = dma.vmem_to_hbm [thread:$0]  %s2219, 128, %s2221, [#allocation4]
    $region17: #{model_forward.1} parent=1 // pred_fallthru
      _
    // Predicated region
    $region18: #{model_forward.1} parent=1 // pred_check
      _
    $region19: #{model_forward.1} parent=1 // pred_check_branch
      %2225 = sbr.rel (0) target = $region21
    $region20: #{model_forward.1} parent=1 // pred_region
      %2227 = dma.done [#allocation4], 128
    $region21: #{model_forward.1} parent=1 // pred_fallthru
      _
    %2228 = vsyncpa [#allocation4], 1

</llo_original>
